<compile_context>
chip_gen: v7x
topology: tpu7x:2x2x1
jax: 0.10.0
libtpu: 0.0.40
codegen_flags: <defaults>
</compile_context>

<pallas_src>
import numpy as np
import jax
import jax.numpy as jnp
from jax.experimental import pallas as pl
from jax.experimental.pallas import tpu as pltpu


# ----------------------------- model dimensions ------------------------------
D_MONO = 16                 # input_dim (monotone inputs)
H_MONO = 32                 # num_hidden_units          (num_hidden_layers = 2)
OUT_INNER = 8               # output_inner_mvnn

D_NM = 8                    # non_mono_input_dim
H_NM = 16                   # non_mono_num_hidden_units (non_mono_num_hidden_layers = 1)
OUT_NM = 8                  # non_mono_output_dim

D_FIN = OUT_INNER + OUT_NM  # final_input_dims = 16
H_FIN = 32                  # final_num_hidden_units    (final_num_hidden_layers = 2)
OUT_FIN = 1                 # final_output_inner_mvnn

LANE = 128                  # uniform padded lane width for every layer

# weight-slab row offsets (all multiples of 8 -> sublane-aligned static slices)
_R0 = D_MONO                # 16   end of layer-1 mono weight (capacity folded)
_R1 = _R0 + D_NM            # 24   end of layer-1 non-mono weight
_R2 = _R1 + LANE            # 152  end of fused layer-2 weight
_R3 = _R2 + LANE            # 280  end of fused output-layer weight
_R4 = _R3 + LANE            # 408  end of final layer-1 weight (capacity folded)
_R5 = _R4 + LANE            # 536  end of final layer-2 weight
_R6 = _R5 + LANE            # 664  end of final output weight
R_ROWS = 16                 # 10 bias/threshold/bound rows, padded to 16
W_ROWS = _R6 + R_ROWS       # 680  total slab rows


# --------------------------------- kernel ------------------------------------
def mvnn_partial_kernel(xm_ref, xn_ref, w_ref, out_ref):
    f32 = jnp.float32
    xm = xm_ref[...]                                   # (bb, 16) monotone inputs
    xn = xn_ref[...]                                   # (bb, 8)  non-mono inputs
    r = w_ref[_R6:W_ROWS, :]                           # (16, 128) bias/bound rows, loaded once

    # fused layer 1: [mono fc1 (capacity pre-folded) | non-mono fc1], block-diag
    h = (jnp.dot(xm, w_ref[0:_R0, :], preferred_element_type=f32)
         + jnp.dot(xn, w_ref[_R0:_R1, :], preferred_element_type=f32)
         + r[0:1, :])
    h = jnp.minimum(jnp.maximum(h, 0.0), r[1:2, :])    # bReLU(0,t) | ReLU (t=+inf)

    # fused layer 2: [mono fc2 | non-mono fc2]
    h = jnp.dot(h, w_ref[_R1:_R2, :], preferred_element_type=f32) + r[2:3, :]
    h = jnp.minimum(jnp.maximum(h, 0.0), r[3:4, :])

    # fused output layers: mono (no bias, identity) | non-mono (bias + ReLU)
    h = jnp.dot(h, w_ref[_R2:_R3, :], preferred_element_type=f32) + r[4:5, :]
    h = jnp.maximum(h, r[5:6, :])                      # identity (lb=-inf) | ReLU (lb=0)

    # final MVNN_GENERIC (final capacity pre-folded into its first layer)
    g = jnp.dot(h, w_ref[_R3:_R4, :], preferred_element_type=f32) + r[6:7, :]
    g = jnp.minimum(jnp.maximum(g, 0.0), r[7:8, :])
    g = jnp.dot(g, w_ref[_R4:_R5, :], preferred_element_type=f32) + r[8:9, :]
    g = jnp.minimum(jnp.maximum(g, 0.0), r[9:10, :])

    # lane-dense output: real result in column 0, columns 1..127 are zeros
    out_ref[...] = jnp.dot(g, w_ref[_R5:_R6, :], preferred_element_type=f32)


def mvnn_partial_forward(x_mono, x_non_mono, w_slab, *, block_b=None):
    b = x_mono.shape[0]
    if block_b is None:
        # Default: ~4 even grid steps -> v7x shards the "parallel" batch axis
        # across both TensorCores with >=2 pipelined steps per core.
        # On single-TC parts (v5e/v6e) with small batches, pass block_b=b for
        # a single grid step (per-step overhead is ~0.35 us with no compute to hide it).
        block_b = max(8, -(-b // 4))
        block_b = ((block_b + 7) // 8) * 8             # sublane-align

    bp = pl.cdiv(b, block_b) * block_b
    xm = x_mono.astype(jnp.float32)
    xn = x_non_mono.astype(jnp.float32)
    if bp != b:
        xm = jnp.pad(xm, ((0, bp - b), (0, 0)))
        xn = jnp.pad(xn, ((0, bp - b), (0, 0)))

    out = pl.pallas_call(
        mvnn_partial_kernel,
        out_shape=jax.ShapeDtypeStruct((bp, LANE), jnp.float32),
        grid_spec=pltpu.PrefetchScalarGridSpec(
            num_scalar_prefetch=0,
            grid=(bp // block_b,),
            in_specs=[
                pl.BlockSpec((block_b, D_MONO), lambda i: (i, 0)),   # mono batch tile
                pl.BlockSpec((block_b, D_NM), lambda i: (i, 0)),     # non-mono batch tile
                pl.BlockSpec((W_ROWS, LANE), lambda i: (0, 0)),      # resident weight+bias slab
            ],
            out_specs=pl.BlockSpec((block_b, LANE), lambda i: (i, 0)),  # lane-dense output
        ),
        compiler_params=pltpu.CompilerParams(
            dimension_semantics=("parallel",)),        # shard batch across TCs on v7x
    )(xm, xn, w_slab)
    return out[:b, :OUT_FIN]


# ----------------------------- parameter setup --------------------------------
def init_raw_params(key):
    ks = iter(jax.random.split(key, 32))

    def u(shape, lo, hi):
        return jax.random.uniform(next(ks), shape, jnp.float32, lo, hi)

    # mono MVNN: capacities > 0, non-negative weights (MVNN convention), ts in (0.5, 1.0]
    cap = u((1, D_MONO), 1.0, 2.0)
    p = dict(
        cap_inv=1.0 / cap,
        w1=u((D_MONO, H_MONO), 0.0, 0.3), b1=u((1, H_MONO), -0.1, 0.1), t1=u((1, H_MONO), 0.5, 1.0),
        w2=u((H_MONO, H_MONO), 0.0, 0.3), b2=u((1, H_MONO), -0.1, 0.1), t2=u((1, H_MONO), 0.5, 1.0),
        wo=u((H_MONO, OUT_INNER), 0.0, 0.3),
        # non-mono MLP (plain Linear + ReLU)
        nmw1=u((D_NM, H_NM), -0.3, 0.3), nmb1=u((1, H_NM), -0.1, 0.1),
        nmw2=u((H_NM, H_NM), -0.3, 0.3), nmb2=u((1, H_NM), -0.1, 0.1),
        nmwo=u((H_NM, OUT_NM), -0.3, 0.3), nmbo=u((1, OUT_NM), -0.1, 0.1),
    )
    # final MVNN
    fcap = u((1, D_FIN), 1.0, 2.0)
    p.update(
        fcap_inv=1.0 / fcap,
        fw1=u((D_FIN, H_FIN), 0.0, 0.3), fb1=u((1, H_FIN), -0.1, 0.1), ft1=u((1, H_FIN), 0.5, 1.0),
        fw2=u((H_FIN, H_FIN), 0.0, 0.3), fb2=u((1, H_FIN), -0.1, 0.1), ft2=u((1, H_FIN), 0.5, 1.0),
        fwo=u((H_FIN, OUT_FIN), 0.0, 0.3),
    )
    return p


def pack_params(p):
    """One-time preprocessing: fold capacity diagonals into first-layer weights
    ((x*c) @ W == x @ (diag(c) W)), build block-diagonal fused weights, pad every
    block to a uniform 128-lane width, and pack weights + bias/threshold/bound
    rows into ONE resident slab."""
    f32 = jnp.float32
    INF = jnp.float32(jnp.inf)

    w1f = p["cap_inv"].T * p["w1"]          # (D_MONO, H_MONO), capacity folded
    fw1f = p["fcap_inv"].T * p["fw1"]       # (D_FIN,  H_FIN),  capacity folded

    def blk(rows, entries):
        m = jnp.zeros((rows, LANE), f32)
        for ro, co, a in entries:
            a = jnp.asarray(a, f32)
            m = m.at[ro:ro + a.shape[0], co:co + a.shape[1]].set(a)
        return m

    # layer 1 split by input (mono / non-mono), both writing into the same 128 lanes
    w1m = blk(D_MONO, [(0, 0, w1f)])                                   # mono -> cols 0..31
    w1n = blk(D_NM, [(0, H_MONO, p["nmw1"])])                          # nm   -> cols 32..47
    # fused block-diagonal hidden / output layers (K padded to the full 128 lanes)
    w2 = blk(LANE, [(0, 0, p["w2"]), (H_MONO, H_MONO, p["nmw2"])])
    w3 = blk(LANE, [(0, 0, p["wo"]), (H_MONO, OUT_INNER, p["nmwo"])])
    # final MVNN layers (inputs occupy cols 0..15 of the 128-lane feature)
    fw1 = blk(LANE, [(0, 0, fw1f)])
    fw2 = blk(LANE, [(0, 0, p["fw2"])])
    fwo = blk(LANE, [(0, 0, p["fwo"])])                                # lane-dense: col 0 real

    # bias / upper-bound / lower-bound rows (mixed activations expressed as clamps)
    rblk = blk(R_ROWS, [
        (0, 0, p["b1"]), (0, H_MONO, p["nmb1"]),
        (1, 0, p["t1"]), (1, H_MONO, jnp.full((1, H_NM), INF, f32)),   # bReLU | ReLU
        (2, 0, p["b2"]), (2, H_MONO, p["nmb2"]),
        (3, 0, p["t2"]), (3, H_MONO, jnp.full((1, H_NM), INF, f32)),
        (4, OUT_INNER, p["nmbo"]),                                     # mono out has no bias
        (5, 0, jnp.full((1, OUT_INNER), -INF, f32)),                   # identity | ReLU lower bound
        (6, 0, p["fb1"]), (7, 0, p["ft1"]),
        (8, 0, p["fb2"]), (9, 0, p["ft2"]),
    ])

    w_slab = jnp.concatenate([w1m, w1n, w2, w3, fw1, fw2, fwo, rblk], axis=0)
    assert w_slab.shape == (W_ROWS, LANE)
    return w_slab


# --------------------------- plain-JAX reference ------------------------------
def ref_forward(x_mono, x_nm, p):
    brelu = lambda h, t: jnp.minimum(jnp.maximum(h, 0.0), t)
    x = x_mono * p["cap_inv"]
    h = brelu(x @ p["w1"] + p["b1"], p["t1"])
    h = brelu(h @ p["w2"] + p["b2"], p["t2"])
    x_mono_m = h @ p["wo"]

    z = jnp.maximum(x_nm @ p["nmw1"] + p["nmb1"], 0.0)
    z = jnp.maximum(z @ p["nmw2"] + p["nmb2"], 0.0)
    z = jnp.maximum(z @ p["nmwo"] + p["nmbo"], 0.0)

    xm = jnp.concatenate([x_mono_m, z], axis=1) * p["fcap_inv"]
    g = brelu(xm @ p["fw1"] + p["fb1"], p["ft1"])
    g = brelu(g @ p["fw2"] + p["fb2"], p["ft2"])
    return g @ p["fwo"]


# ----------------------------------- main --------------------------------------
if __name__ == "__main__":
    key = jax.random.PRNGKey(0)
    k_in, k_nm, k_par = jax.random.split(key, 3)

    B = 512   # small demo batch; feature dims come from the module spec
    x_mono = jax.random.uniform(k_in, (B, D_MONO), jnp.float32, 0.0, 2.0)
    x_non_mono = jax.random.normal(k_nm, (B, D_NM), jnp.float32)

    raw = init_raw_params(k_par)
    w_slab = pack_params(raw)

    out = mvnn_partial_forward(x_mono, x_non_mono, w_slab)
    out = jax.block_until_ready(out)

    ref = ref_forward(x_mono, x_non_mono, raw)
    np.testing.assert_allclose(np.asarray(out), np.asarray(ref), rtol=1e-4, atol=1e-4)

    print("KERNEL_OK")
</pallas_src>

<mosaic_0001>
module attributes {stable_mosaic.version = 11 : i64} {
  func.func @mvnn_partial_kernel(%arg0: i32, %arg1: memref<128x16xf32, #tpu.memory_space<vmem>>, %arg2: memref<128x8xf32, #tpu.memory_space<vmem>>, %arg3: memref<680x128xf32, #tpu.memory_space<vmem>>, %arg4: memref<128x128xf32, #tpu.memory_space<vmem>>) attributes {dimension_semantics = [#tpu.dimension_semantics<parallel>], iteration_bounds = array<i64: 4>, scalar_prefetch = 0 : i64, scratch_operands = 0 : i64, tpu.core_type = #tpu.core_type<tc>, window_params = [{transform_indices = @transform_0, window_bounds = array<i64: 128, 16>}, {transform_indices = @transform_1, window_bounds = array<i64: 128, 8>}, {pipeline_mode = #tpu.pipeline_mode<synchronous>, transform_indices = @transform_2, window_bounds = array<i64: 680, 128>}, {transform_indices = @transform_3, window_bounds = array<i64: 128, 128>}]} {
    %c0 = arith.constant 0 : index
    %c0_0 = arith.constant 0 : index
    %0 = vector.load %arg1[%c0, %c0_0] : memref<128x16xf32, #tpu.memory_space<vmem>>, vector<128x16xf32>
    %c0_1 = arith.constant 0 : index
    %c0_2 = arith.constant 0 : index
    %1 = vector.load %arg2[%c0_1, %c0_2] : memref<128x8xf32, #tpu.memory_space<vmem>>, vector<128x8xf32>
    %c664 = arith.constant 664 : index
    %c0_3 = arith.constant 0 : index
    %2 = vector.load %arg3[%c664, %c0_3] : memref<680x128xf32, #tpu.memory_space<vmem>>, vector<16x128xf32>
    %c0_4 = arith.constant 0 : index
    %c0_5 = arith.constant 0 : index
    %3 = vector.load %arg3[%c0_4, %c0_5] : memref<680x128xf32, #tpu.memory_space<vmem>>, vector<16x128xf32>
    %cst = arith.constant dense<0.000000e+00> : vector<128x128xf32>
    %4 = tpu.matmul %0, %3, %cst {dimension_numbers = #tpu.dot_dimension_numbers<[1], [0], [0], [1], [0, 0, 1, 1], [], []>} : vector<128x16xf32>, vector<16x128xf32>, vector<128x128xf32> -> vector<128x128xf32>
    %c16 = arith.constant 16 : index
    %c0_6 = arith.constant 0 : index
    %5 = vector.load %arg3[%c16, %c0_6] : memref<680x128xf32, #tpu.memory_space<vmem>>, vector<8x128xf32>
    %cst_7 = arith.constant dense<0.000000e+00> : vector<128x128xf32>
    %6 = tpu.matmul %1, %5, %cst_7 {dimension_numbers = #tpu.dot_dimension_numbers<[1], [0], [0], [1], [0, 0, 1, 1], [], []>} : vector<128x8xf32>, vector<8x128xf32>, vector<128x128xf32> -> vector<128x128xf32>
    %7 = arith.addf %4, %6 : vector<128x128xf32>
    %8 = vector.extract_strided_slice %2 {offsets = [0, 0], sizes = [1, 128], strides = [1, 1]} : vector<16x128xf32> to vector<1x128xf32>
    %9 = vector.broadcast %8 : vector<1x128xf32> to vector<128x128xf32>
    %10 = arith.addf %7, %9 : vector<128x128xf32>
    %cst_8 = arith.constant 0.000000e+00 : f32
    %11 = vector.broadcast %cst_8 : f32 to vector<128x128xf32>
    %12 = arith.maximumf %10, %11 : vector<128x128xf32>
    %13 = vector.extract_strided_slice %2 {offsets = [1, 0], sizes = [1, 128], strides = [1, 1]} : vector<16x128xf32> to vector<1x128xf32>
    %14 = vector.broadcast %13 : vector<1x128xf32> to vector<128x128xf32>
    %15 = arith.minimumf %12, %14 : vector<128x128xf32>
    %c24 = arith.constant 24 : index
    %c0_9 = arith.constant 0 : index
    %16 = vector.load %arg3[%c24, %c0_9] : memref<680x128xf32, #tpu.memory_space<vmem>>, vector<128x128xf32>
    %cst_10 = arith.constant dense<0.000000e+00> : vector<128x128xf32>
    %17 = tpu.matmul %15, %16, %cst_10 {dimension_numbers = #tpu.dot_dimension_numbers<[1], [0], [0], [1], [0, 0, 1, 1], [], []>} : vector<128x128xf32>, vector<128x128xf32>, vector<128x128xf32> -> vector<128x128xf32>
    %18 = vector.extract_strided_slice %2 {offsets = [2, 0], sizes = [1, 128], strides = [1, 1]} : vector<16x128xf32> to vector<1x128xf32>
    %19 = vector.broadcast %18 : vector<1x128xf32> to vector<128x128xf32>
    %20 = arith.addf %17, %19 : vector<128x128xf32>
    %cst_11 = arith.constant 0.000000e+00 : f32
    %21 = vector.broadcast %cst_11 : f32 to vector<128x128xf32>
    %22 = arith.maximumf %20, %21 : vector<128x128xf32>
    %23 = vector.extract_strided_slice %2 {offsets = [3, 0], sizes = [1, 128], strides = [1, 1]} : vector<16x128xf32> to vector<1x128xf32>
    %24 = vector.broadcast %23 : vector<1x128xf32> to vector<128x128xf32>
    %25 = arith.minimumf %22, %24 : vector<128x128xf32>
    %c152 = arith.constant 152 : index
    %c0_12 = arith.constant 0 : index
    %26 = vector.load %arg3[%c152, %c0_12] : memref<680x128xf32, #tpu.memory_space<vmem>>, vector<128x128xf32>
    %cst_13 = arith.constant dense<0.000000e+00> : vector<128x128xf32>
    %27 = tpu.matmul %25, %26, %cst_13 {dimension_numbers = #tpu.dot_dimension_numbers<[1], [0], [0], [1], [0, 0, 1, 1], [], []>} : vector<128x128xf32>, vector<128x128xf32>, vector<128x128xf32> -> vector<128x128xf32>
    %28 = vector.extract_strided_slice %2 {offsets = [4, 0], sizes = [1, 128], strides = [1, 1]} : vector<16x128xf32> to vector<1x128xf32>
    %29 = vector.broadcast %28 : vector<1x128xf32> to vector<128x128xf32>
    %30 = arith.addf %27, %29 : vector<128x128xf32>
    %31 = vector.extract_strided_slice %2 {offsets = [5, 0], sizes = [1, 128], strides = [1, 1]} : vector<16x128xf32> to vector<1x128xf32>
    %32 = vector.broadcast %31 : vector<1x128xf32> to vector<128x128xf32>
    %33 = arith.maximumf %30, %32 : vector<128x128xf32>
    %c280 = arith.constant 280 : index
    %c0_14 = arith.constant 0 : index
    %34 = vector.load %arg3[%c280, %c0_14] : memref<680x128xf32, #tpu.memory_space<vmem>>, vector<128x128xf32>
    %cst_15 = arith.constant dense<0.000000e+00> : vector<128x128xf32>
    %35 = tpu.matmul %33, %34, %cst_15 {dimension_numbers = #tpu.dot_dimension_numbers<[1], [0], [0], [1], [0, 0, 1, 1], [], []>} : vector<128x128xf32>, vector<128x128xf32>, vector<128x128xf32> -> vector<128x128xf32>
    %36 = vector.extract_strided_slice %2 {offsets = [6, 0], sizes = [1, 128], strides = [1, 1]} : vector<16x128xf32> to vector<1x128xf32>
    %37 = vector.broadcast %36 : vector<1x128xf32> to vector<128x128xf32>
    %38 = arith.addf %35, %37 : vector<128x128xf32>
    %cst_16 = arith.constant 0.000000e+00 : f32
    %39 = vector.broadcast %cst_16 : f32 to vector<128x128xf32>
    %40 = arith.maximumf %38, %39 : vector<128x128xf32>
    %41 = vector.extract_strided_slice %2 {offsets = [7, 0], sizes = [1, 128], strides = [1, 1]} : vector<16x128xf32> to vector<1x128xf32>
    %42 = vector.broadcast %41 : vector<1x128xf32> to vector<128x128xf32>
    %43 = arith.minimumf %40, %42 : vector<128x128xf32>
    %c408 = arith.constant 408 : index
    %c0_17 = arith.constant 0 : index
    %44 = vector.load %arg3[%c408, %c0_17] : memref<680x128xf32, #tpu.memory_space<vmem>>, vector<128x128xf32>
    %cst_18 = arith.constant dense<0.000000e+00> : vector<128x128xf32>
    %45 = tpu.matmul %43, %44, %cst_18 {dimension_numbers = #tpu.dot_dimension_numbers<[1], [0], [0], [1], [0, 0, 1, 1], [], []>} : vector<128x128xf32>, vector<128x128xf32>, vector<128x128xf32> -> vector<128x128xf32>
    %46 = vector.extract_strided_slice %2 {offsets = [8, 0], sizes = [1, 128], strides = [1, 1]} : vector<16x128xf32> to vector<1x128xf32>
    %47 = vector.broadcast %46 : vector<1x128xf32> to vector<128x128xf32>
    %48 = arith.addf %45, %47 : vector<128x128xf32>
    %cst_19 = arith.constant 0.000000e+00 : f32
    %49 = vector.broadcast %cst_19 : f32 to vector<128x128xf32>
    %50 = arith.maximumf %48, %49 : vector<128x128xf32>
    %51 = vector.extract_strided_slice %2 {offsets = [9, 0], sizes = [1, 128], strides = [1, 1]} : vector<16x128xf32> to vector<1x128xf32>
    %52 = vector.broadcast %51 : vector<1x128xf32> to vector<128x128xf32>
    %53 = arith.minimumf %50, %52 : vector<128x128xf32>
    %c536 = arith.constant 536 : index
    %c0_20 = arith.constant 0 : index
    %54 = vector.load %arg3[%c536, %c0_20] : memref<680x128xf32, #tpu.memory_space<vmem>>, vector<128x128xf32>
    %cst_21 = arith.constant dense<0.000000e+00> : vector<128x128xf32>
    %55 = tpu.matmul %53, %54, %cst_21 {dimension_numbers = #tpu.dot_dimension_numbers<[1], [0], [0], [1], [0, 0, 1, 1], [], []>} : vector<128x128xf32>, vector<128x128xf32>, vector<128x128xf32> -> vector<128x128xf32>
    %c0_22 = arith.constant 0 : index
    %c0_23 = arith.constant 0 : index
    %56 = vector.load %arg4[%c0_22, %c0_23] : memref<128x128xf32, #tpu.memory_space<vmem>>, vector<128x128xf32>
    tpu.vector_store %arg4[%c0_22, %c0_23], %55 {strides = array<i32>} : memref<128x128xf32, #tpu.memory_space<vmem>>, vector<128x128xf32>,
    return
  }
  func.func @transform_0(%arg0: i32) -> (i32, i32) {
    %c0_i32 = arith.constant 0 : i32
    %c0_i32_0 = arith.constant 0 : i32
    return %arg0, %c0_i32 : i32, i32
  }
  func.func @transform_1(%arg0: i32) -> (i32, i32) {
    %c0_i32 = arith.constant 0 : i32
    %c0_i32_0 = arith.constant 0 : i32
    return %arg0, %c0_i32 : i32, i32
  }
  func.func @transform_2(%arg0: i32) -> (i32, i32) {
    %c0_i32 = arith.constant 0 : i32
    %c0_i32_0 = arith.constant 0 : i32
    %c0_i32_1 = arith.constant 0 : i32
    return %c0_i32, %c0_i32_0 : i32, i32
  }
  func.func @transform_3(%arg0: i32) -> (i32, i32) {
    %c0_i32 = arith.constant 0 : i32
    %c0_i32_0 = arith.constant 0 : i32
    return %arg0, %c0_i32 : i32, i32
  }
}

</mosaic_0001>

<llo_original>
// kernel: tpu_custom_call.1
$region0: #{tpu_custom_call.1}
  #allocation0 [shape = 'u32[]', space=smem, size = 0x4, offset = 0x4, fixed_abs, tag = 'smem constant byte address 0x4 - core index']
  #allocation1 [shape = 'u32[144,128]{1,0:T(1,128)}', space=vmem, size = 0x12000, scoped, tag = 'internal scratch']
  %s0 = inlined_call_operand.vmem [shape: f32[512,16], index: 0, kind: input, shape index: {}]
  %s1 = inlined_call_operand.vmem [shape: f32[512,8], index: 1, kind: input, shape index: {}]
  %s2 = inlined_call_operand.vmem [shape: f32[680,128], index: 2, kind: input, shape index: {}]
  %s3 = inlined_call_operand.hbm [shape: f32[512,128], index: 3, kind: output, shape index: {}]
  %s4 = sld [smem:[#allocation0]]
  $region45: #{tpu_custom_call.1} parent=0
    _
  %s6 = ssub.s32 1, %s4
  %s7 = scalar_select 0, %s6, %s4
  $region1: #{tpu_custom_call.1} parent=0
    #allocation2 [shape = 'u8[131072]{0}', space=vmem, size = 0x20000, scoped, tag = 'output window, operand 0']
    #allocation3 [shape = 's32[2]{0}', space=sflag, size = 0x8, scoped, tag = 'scoped memory for tpu_custom_call.1']
    %8 = vsyncpa [#allocation3], 0
    %s9 = scalar_lea.sflag [#allocation3], 1
    %10 = vsyncpa %s9, 0
    loop: start=0, step=1, limit=6
    $region2: #{tpu_custom_call.1} parent=1 // loop_pre_header
      _
    $region3: #{tpu_custom_call.1} parent=1 // loop_header
      %s12 = sphi 0, %s16
      %p13 = scmp.ge.s32.totalorder %s12, 6
      %s22 = sphi 0, %s24
      %s25 = sphi 0, %s22
      %s26 = sphi 0, %s25
      %s42 = sphi 0, %s26
      %s48 = sphi 0, %s50
      %s51 = sphi 0, %s48
      %s52 = sphi 0, %s51
      %s68 = sphi 0, %s52
      %s72 = sphi 0, %s72
      %s74 = sphi 0, %s72
      %s75 = sphi 0, %s74
      %s89 = sphi 0, %s75
      %s95 = sphi 0, %s97
      %s98 = sphi 0, %s95
      %s99 = sphi 0, %s98
      %s115 = sphi 0, %s99
    $region4: #{tpu_custom_call.1} parent=1 // loop_header_branch
      %15 = sbr.rel (%p13) target = $region8
    $region5: #{tpu_custom_call.1} parent=1 // loop_body
      %s17 = ssub.s32 %s12, 1
      %s18 = ssub.s32 %s12, 2
      %s19 = sadd.s32 %s12, 1
      %s20 = ssub.s32 %s12, %s19
      %p21 = scmp.eq.s32.totalorder %s20, 0
      %s23 = sadd.s32 %s22, 1
      %s24 = scalar_select %p21, %s22, %s23
      %p27 = pneg %p21
      %p28 = scmp.eq.s32.totalorder %s12, 3
      %p29 = por %p27, %p28
      %p30 = scmp.ne.s32.totalorder %s22, %s25
      %p31 = scmp.eq.s32.totalorder %s12, 0
      %p32 = por %p30, %p31
      %p33 = scmp.ne.s32.totalorder %s22, %s25
      %p34 = scmp.eq.s32.totalorder %s17, 3
      %p35 = por %p33, %p34
      %p36 = scmp.ne.s32.totalorder %s25, %s26
      %p37 = scmp.eq.s32.totalorder %s17, 0
      %p38 = por %p36, %p37
      %p39 = scmp.ne.s32.totalorder %s25, %s26
      %p40 = scmp.eq.s32.totalorder %s18, 3
      %p41 = por %p39, %p40
      %p43 = scmp.ne.s32.totalorder %s26, %s42
      %p44 = scmp.eq.s32.totalorder %s18, 0
      %p45 = por %p43, %p44
      %s46 = ssub.s32 %s12, %s19
      %p47 = scmp.eq.s32.totalorder %s46, 0
      %s49 = sadd.s32 %s48, 1
      %s50 = scalar_select %p47, %s48, %s49
      %p53 = pneg %p47
      %p54 = scmp.eq.s32.totalorder %s12, 3
      %p55 = por %p53, %p54
      %p56 = scmp.ne.s32.totalorder %s48, %s51
      %p57 = scmp.eq.s32.totalorder %s12, 0
      %p58 = por %p56, %p57
      %p59 = scmp.ne.s32.totalorder %s48, %s51
      %p60 = scmp.eq.s32.totalorder %s17, 3
      %p61 = por %p59, %p60
      %p62 = scmp.ne.s32.totalorder %s51, %s52
      %p63 = scmp.eq.s32.totalorder %s17, 0
      %p64 = por %p62, %p63
      %p65 = scmp.ne.s32.totalorder %s51, %s52
      %p66 = scmp.eq.s32.totalorder %s18, 3
      %p67 = por %p65, %p66
      %p69 = scmp.ne.s32.totalorder %s52, %s68
      %p70 = scmp.eq.s32.totalorder %s18, 0
      %p71 = por %p69, %p70
      %s73 = sadd.s32 %s72, 1
      %p76 = scmp.eq.s32.totalorder %s12, 3
      %p77 = scmp.ne.s32.totalorder %s72, %s74
      %p78 = scmp.eq.s32.totalorder %s12, 0
      %p79 = por %p77, %p78
      %p80 = scmp.ne.s32.totalorder %s72, %s74
      %p81 = scmp.eq.s32.totalorder %s17, 3
      %p82 = por %p80, %p81
      %p83 = scmp.ne.s32.totalorder %s74, %s75
      %p84 = scmp.eq.s32.totalorder %s17, 0
      %p85 = por %p83, %p84
      %p86 = scmp.ne.s32.totalorder %s74, %s75
      %p87 = scmp.eq.s32.totalorder %s18, 3
      %p88 = por %p86, %p87
      %p90 = scmp.ne.s32.totalorder %s75, %s89
      %p91 = scmp.eq.s32.totalorder %s18, 0
      %p92 = por %p90, %p91
      %s93 = ssub.s32 %s12, %s19
      %p94 = scmp.eq.s32.totalorder %s93, 0
      %s96 = sadd.s32 %s95, 1
      %s97 = scalar_select %p94, %s95, %s96
      %p100 = pneg %p94
      %p101 = scmp.eq.s32.totalorder %s12, 3
      %p102 = por %p100, %p101
      %p103 = scmp.ne.s32.totalorder %s95, %s98
      %p104 = scmp.eq.s32.totalorder %s12, 0
      %p105 = por %p103, %p104
      %p106 = scmp.ne.s32.totalorder %s95, %s98
      %p107 = scmp.eq.s32.totalorder %s17, 3
      %p108 = por %p106, %p107
      %p109 = scmp.ne.s32.totalorder %s98, %s99
      %p110 = scmp.eq.s32.totalorder %s17, 0
      %p111 = por %p109, %p110
      %p112 = scmp.ne.s32.totalorder %s98, %s99
      %p113 = scmp.eq.s32.totalorder %s18, 3
      %p114 = por %p112, %p113
      %p116 = scmp.ne.s32.totalorder %s99, %s115
      %p117 = scmp.eq.s32.totalorder %s18, 0
      %p118 = por %p116, %p117
      %p119 = scmp.le.s32.totalorder 1, %s12
      %p120 = scmp.lt.s32.totalorder %s12, 5
      %p121 = pnand %p119, %p120
      %p122 = pneg %p121
      // Predicated region
      $region9: #{tpu_custom_call.1} parent=5 // pred_check
        _
      $region10: #{tpu_custom_call.1} parent=5 // pred_check_branch
        %124 = sbr.rel (%p121) target = $region12
      $region11: #{tpu_custom_call.1} parent=5 // pred_region
        %s125 = ssub.s32 %s12, 1
        // Predicated region
        $region13: #{tpu_custom_call.1} parent=11 // pred_check
          %p126 = pneg %p85
        $region14: #{tpu_custom_call.1} parent=11 // pred_check_branch
          %128 = sbr.rel (%p126) target = $region16
        $region15: #{tpu_custom_call.1} parent=11 // pred_region
          _
        $region16: #{tpu_custom_call.1} parent=11 // pred_fallthru
          _
      $region12: #{tpu_custom_call.1} parent=5 // pred_fallthru
        _
      %p129 = scmp.lt.s32.totalorder %s12, 4
      // Predicated region
      $region17: #{tpu_custom_call.1} parent=5 // pred_check
        %p130 = pneg %p129
      $region18: #{tpu_custom_call.1} parent=5 // pred_check_branch
        %132 = sbr.rel (%p130) target = $region20
      $region19: #{tpu_custom_call.1} parent=5 // pred_region
        // Predicated region
        $region21: #{tpu_custom_call.1} parent=19 // pred_check
          %p133 = pneg %p32
        $region22: #{tpu_custom_call.1} parent=19 // pred_check_branch
          %135 = sbr.rel (%p133) target = $region24
        $region23: #{tpu_custom_call.1} parent=19 // pred_region
          %s136 = smul.u32 16, %s12
          %p137 = scmp.lt.s32.totalorder %s136, 63
          %s138 = scalar_select %p137, %s136, 63
          %s139 = smul.addr %s138, 8
          %s140 = scalar_lea.vmem %s0, %s139
          %s141 = smul.u32 16, %s12
        $region24: #{tpu_custom_call.1} parent=19 // pred_fallthru
          _
        // Predicated region
        $region25: #{tpu_custom_call.1} parent=19 // pred_check
          %p142 = pneg %p58
        $region26: #{tpu_custom_call.1} parent=19 // pred_check_branch
          %144 = sbr.rel (%p142) target = $region28
        $region27: #{tpu_custom_call.1} parent=19 // pred_region
          %s145 = smul.u32 16, %s12
          %p146 = scmp.lt.s32.totalorder %s145, 63
          %s147 = scalar_select %p146, %s145, 63
          %s148 = smul.addr %s147, 8
          %s149 = scalar_lea.vmem %s1, %s148
          %s150 = smul.u32 16, %s12
        $region28: #{tpu_custom_call.1} parent=19 // pred_fallthru
          _
      $region20: #{tpu_custom_call.1} parent=5 // pred_fallthru
        _
      %p151 = scmp.le.s32.totalorder 1, %s12
      %p152 = scmp.lt.s32.totalorder %s12, 5
      %p153 = pnand %p151, %p152
      %p154 = pneg %p153
      // Predicated region
      $region29: #{tpu_custom_call.1} parent=5 // pred_check
        _
      $region30: #{tpu_custom_call.1} parent=5 // pred_check_branch
        %156 = sbr.rel (%p153) target = $region32
      $region31: #{tpu_custom_call.1} parent=5 // pred_region
        %s157 = ssub.s32 %s12, 1
        %s158 = smul.u32 16, %s17
        %p159 = scmp.lt.s32.totalorder %s158, 63
        %s160 = scalar_select %p159, %s158, 63
        %s161 = smul.addr %s160, 8
        %s162 = scalar_lea.vmem %s0, %s161
        %p163 = pneg %p38
        %p164 = pneg %p35
        %s165 = smul.u32 16, %s17
        %p166 = scmp.lt.s32.totalorder %s165, 63
        %s167 = scalar_select %p166, %s165, 63
        %s168 = smul.addr %s167, 8
        %s169 = scalar_lea.vmem %s1, %s168
        %p170 = pneg %p64
        %p171 = pneg %p61
        %p172 = pneg %p85
        %p173 = pneg %p82
        %p174 = pneg %p111
        %p175 = pneg %p108
        %s176 = sand.u32 %s98, 1
        %s177 = scalar_lea.sflag [#allocation3], %s176
        %s178 = sand.u32 %s98, 1
        %s179 = smul.addr %s178, 128
        %s180 = scalar_lea.vmem [#allocation2], %s179
        %s181 = smul.u32 16, %s17
        %p182 = scmp.lt.s32.totalorder %s181, 63
        %s183 = scalar_select %p182, %s181, 63
        %s184 = smul.addr %s183, 8
        %s185 = scalar_lea.vmem %s0, %s184
        %s186 = smul.u32 16, %s17
        %s187 = smul.u32 16, %s17
        %p188 = scmp.lt.s32.totalorder %s187, 63
        %s189 = scalar_select %p188, %s187, 63
        %s190 = smul.addr %s189, 8
        %s191 = scalar_lea.vmem %s1, %s190
        %s192 = smul.u32 16, %s17
        %s193 = smul.u32 16, %s17
        %v194 = vld [vmem:[%s185] sm:$0xff]
        %v195 = vld [vmem:[%s185 + $0x8] sm:$0xff]
        %v196 = vld [vmem:[%s185 + $0x10] sm:$0xff]
        %v197 = vld [vmem:[%s185 + $0x18] sm:$0xff]
        %v198 = vld [vmem:[%s185 + $0x20] sm:$0xff]
        %v199 = vld [vmem:[%s185 + $0x28] sm:$0xff]
        %v200 = vld [vmem:[%s185 + $0x30] sm:$0xff]
        %v201 = vld [vmem:[%s185 + $0x38] sm:$0xff]
        %v202 = vld [vmem:[%s185 + $0x40] sm:$0xff]
        %v203 = vld [vmem:[%s185 + $0x48] sm:$0xff]
        %v204 = vld [vmem:[%s185 + $0x50] sm:$0xff]
        %v205 = vld [vmem:[%s185 + $0x58] sm:$0xff]
        %v206 = vld [vmem:[%s185 + $0x60] sm:$0xff]
        %v207 = vld [vmem:[%s185 + $0x68] sm:$0xff]
        %v208 = vld [vmem:[%s185 + $0x70] sm:$0xff]
        %v209 = vld [vmem:[%s185 + $0x78] sm:$0xff]
        %v210 = vld [vmem:[%s191] sm:$0xff]
        %v211 = vld [vmem:[%s191 + $0x8] sm:$0xff]
        %v212 = vld [vmem:[%s191 + $0x10] sm:$0xff]
        %v213 = vld [vmem:[%s191 + $0x18] sm:$0xff]
        %v214 = vld [vmem:[%s191 + $0x20] sm:$0xff]
        %v215 = vld [vmem:[%s191 + $0x28] sm:$0xff]
        %v216 = vld [vmem:[%s191 + $0x30] sm:$0xff]
        %v217 = vld [vmem:[%s191 + $0x38] sm:$0xff]
        %v218 = vld [vmem:[%s191 + $0x40] sm:$0xff]
        %v219 = vld [vmem:[%s191 + $0x48] sm:$0xff]
        %v220 = vld [vmem:[%s191 + $0x50] sm:$0xff]
        %v221 = vld [vmem:[%s191 + $0x58] sm:$0xff]
        %v222 = vld [vmem:[%s191 + $0x60] sm:$0xff]
        %v223 = vld [vmem:[%s191 + $0x68] sm:$0xff]
        %v224 = vld [vmem:[%s191 + $0x70] sm:$0xff]
        %v225 = vld [vmem:[%s191 + $0x78] sm:$0xff]
        %v226 = vld [vmem:[%s2 + $0x298] sm:$0xff]
        %v227 = vld [vmem:[%s2 + $0x2a0] sm:$0xff]
        %v228 = vld [vmem:[%s2] sm:$0xff]
        %v229 = vld [vmem:[%s2 + $0x8] sm:$0xff]
        %v230 = vld [vmem:[%s2 + $0x10] sm:$0xff]
        %vm231 = vcmask 64512
        %v233 = vsel %vm231, %v210, 0
        %v236 = vsel %vm231, %v211, 0
        %v239 = vsel %vm231, %v212, 0
        %v242 = vsel %vm231, %v213, 0
        %v245 = vsel %vm231, %v214, 0
        %v248 = vsel %vm231, %v215, 0
        %v251 = vsel %vm231, %v216, 0
        %v254 = vsel %vm231, %v217, 0
        %v257 = vsel %vm231, %v218, 0
        %v260 = vsel %vm231, %v219, 0
        %v263 = vsel %vm231, %v220, 0
        %v266 = vsel %vm231, %v221, 0
        %v269 = vsel %vm231, %v222, 0
        %v272 = vsel %vm231, %v223, 0
        %v275 = vsel %vm231, %v224, 0
        %v278 = vsel %vm231, %v225, 0
        %280 = vmatprep.subr.mxu0 0.0
        %281 = vmatpush1.msra.mxu0 %v230
        %282 = vmatprep.subr.mxu0 0.0
        %283 = vmatpush1.msra.mxu0 0.0
        %284 = vmatprep.subr.mxu0 0.0
        %285 = vmatpush1.msra.mxu0 0.0
        %286 = vmatprep.subr.mxu0 0.0
        %287 = vmatpush1.msra.mxu0 0.0
        %288 = vmatprep.subr.mxu0 0.0
        %289 = vmatpush1.msra.mxu0 0.0
        %290 = vmatprep.subr.mxu0 0.0
        %291 = vmatpush1.msra.mxu0 0.0
        %292 = vmatprep.subr.mxu0 0.0
        %293 = vmatpush1.msra.mxu0 0.0
        %294 = vmatprep.subr.mxu0 0.0
        %295 = vmatpush1.msra.mxu0 0.0
        %296 = vmatprep.subr.mxu0 0.0
        %297 = vmatpush1.msra.mxu0 0.0
        %298 = vmatprep.subr.mxu0 0.0
        %299 = vmatpush1.msra.mxu0 0.0
        %300 = vmatprep.subr.mxu0 0.0
        %301 = vmatpush1.msra.mxu0 0.0
        %302 = vmatprep.subr.mxu0 0.0
        %303 = vmatpush1.msra.mxu0 0.0
        %304 = vmatprep.subr.mxu0 0.0
        %305 = vmatpush1.msra.mxu0 0.0
        %306 = vmatprep.subr.mxu0 0.0
        %307 = vmatpush1.msra.mxu0 0.0
        %308 = vmatprep.subr.mxu0 0.0
        %309 = vmatpush1.msra.mxu0 0.0
        %310 = vmatprep.subr.mxu0 0.0
        %311 = vmatpush1.msra.mxu0 0.0
        %312 = vmatprep.subr.mxu0 0.0
        %313 = vmatpush1.msra.mxu0 0.0
        %314 = vmatprep.subr.mxu0 0.0
        %315 = vmatpush1.msra.mxu0 0.0
        %316 = vmatprep.subr.mxu0 0.0
        %317 = vmatpush1.msra.mxu0 0.0
        %318 = vmatprep.subr.mxu0 0.0
        %319 = vmatpush1.msra.mxu0 0.0
        %320 = vmatprep.subr.mxu0 0.0
        %321 = vmatpush1.msra.mxu0 0.0
        %322 = vmatprep.subr.mxu0 0.0
        %323 = vmatpush1.msra.mxu0 0.0
        %324 = vmatprep.subr.mxu0 0.0
        %325 = vmatpush1.msra.mxu0 0.0
        %326 = vmatprep.subr.mxu0 0.0
        %327 = vmatpush1.msra.mxu0 0.0
        %328 = vmatprep.subr.mxu0 0.0
        %329 = vmatpush1.msra.mxu0 0.0
        %330 = vmatprep.subr.mxu0 0.0
        %331 = vmatpush1.msra.mxu0 0.0
        %332 = vmatprep.subr.mxu0 0.0
        %333 = vmatpush1.msra.mxu0 0.0
        %334 = vmatprep.subr.mxu0 0.0
        %335 = vmatpush1.msra.mxu0 0.0
        %336 = vmatprep.subr.mxu0 0.0
        %337 = vmatpush1.msra.mxu0 0.0
        %338 = vmatprep.subr.mxu0 0.0
        %339 = vmatpush1.msra.mxu0 0.0
        %340 = vmatprep.subr.mxu0 0.0
        %341 = vmatpush1.msra.mxu0 0.0
        %342 = vmatprep.subr.mxu0 0.0
        %343 = vmatpush1.msra.mxu0 0.0
        %344 = vmatprep.mubr.f32.mxu0 0.0
        %345 = vmatmul.mubr.f32.gmra.mrb[0].mxu0 %v233
        %v346 = vpop.f32.mrb[0].mxu0
        %v347 = vadd.f32 0.0, %v346
        %v348 = vpop.f32.mrb[0].mxu0
        %349 = vmatprep.mubr.f32.mxu0 0.0
        %350 = vmatmul.mubr.f32.gmra.mrb[0].mxu0 %v236
        %v351 = vpop.f32.mrb[0].mxu0
        %v352 = vadd.f32 0.0, %v351
        %v353 = vpop.f32.mrb[0].mxu0
        %354 = vmatprep.mubr.f32.mxu0 0.0
        %355 = vmatmul.mubr.f32.gmra.mrb[0].mxu0 %v239
        %v356 = vpop.f32.mrb[0].mxu0
        %v357 = vadd.f32 0.0, %v356
        %v358 = vpop.f32.mrb[0].mxu0
        %359 = vmatprep.mubr.f32.mxu0 0.0
        %360 = vmatmul.mubr.f32.gmra.mrb[0].mxu0 %v242
        %v361 = vpop.f32.mrb[0].mxu0
        %v362 = vadd.f32 0.0, %v361
        %v363 = vpop.f32.mrb[0].mxu0
        %364 = vmatprep.mubr.f32.mxu0 0.0
        %365 = vmatmul.mubr.f32.gmra.mrb[0].mxu0 %v245
        %v366 = vpop.f32.mrb[0].mxu0
        %v367 = vadd.f32 0.0, %v366
        %v368 = vpop.f32.mrb[0].mxu0
        %369 = vmatprep.mubr.f32.mxu0 0.0
        %370 = vmatmul.mubr.f32.gmra.mrb[0].mxu0 %v248
        %v371 = vpop.f32.mrb[0].mxu0
        %v372 = vadd.f32 0.0, %v371
        %v373 = vpop.f32.mrb[0].mxu0
        %374 = vmatprep.mubr.f32.mxu0 0.0
        %375 = vmatmul.mubr.f32.gmra.mrb[0].mxu0 %v251
        %v376 = vpop.f32.mrb[0].mxu0
        %v377 = vadd.f32 0.0, %v376
        %v378 = vpop.f32.mrb[0].mxu0
        %379 = vmatprep.mubr.f32.mxu0 0.0
        %380 = vmatmul.mubr.f32.gmra.mrb[0].mxu0 %v254
        %v381 = vpop.f32.mrb[0].mxu0
        %v382 = vadd.f32 0.0, %v381
        %v383 = vpop.f32.mrb[0].mxu0
        %384 = vmatprep.mubr.f32.mxu0 0.0
        %385 = vmatmul.mubr.f32.gmra.mrb[0].mxu0 %v257
        %v386 = vpop.f32.mrb[0].mxu0
        %v387 = vadd.f32 0.0, %v386
        %v388 = vpop.f32.mrb[0].mxu0
        %389 = vmatprep.mubr.f32.mxu0 0.0
        %390 = vmatmul.mubr.f32.gmra.mrb[0].mxu0 %v260
        %v391 = vpop.f32.mrb[0].mxu0
        %v392 = vadd.f32 0.0, %v391
        %v393 = vpop.f32.mrb[0].mxu0
        %394 = vmatprep.mubr.f32.mxu0 0.0
        %395 = vmatmul.mubr.f32.gmra.mrb[0].mxu0 %v263
        %v396 = vpop.f32.mrb[0].mxu0
        %v397 = vadd.f32 0.0, %v396
        %v398 = vpop.f32.mrb[0].mxu0
        %399 = vmatprep.mubr.f32.mxu0 0.0
        %400 = vmatmul.mubr.f32.gmra.mrb[0].mxu0 %v266
        %v401 = vpop.f32.mrb[0].mxu0
        %v402 = vadd.f32 0.0, %v401
        %v403 = vpop.f32.mrb[0].mxu0
        %404 = vmatprep.mubr.f32.mxu0 0.0
        %405 = vmatmul.mubr.f32.gmra.mrb[0].mxu0 %v269
        %v406 = vpop.f32.mrb[0].mxu0
        %v407 = vadd.f32 0.0, %v406
        %v408 = vpop.f32.mrb[0].mxu0
        %409 = vmatprep.mubr.f32.mxu0 0.0
        %410 = vmatmul.mubr.f32.gmra.mrb[0].mxu0 %v272
        %v411 = vpop.f32.mrb[0].mxu0
        %v412 = vadd.f32 0.0, %v411
        %v413 = vpop.f32.mrb[0].mxu0
        %414 = vmatprep.mubr.f32.mxu0 0.0
        %415 = vmatmul.mubr.f32.gmra.mrb[0].mxu0 %v275
        %v416 = vpop.f32.mrb[0].mxu0
        %v417 = vadd.f32 0.0, %v416
        %v418 = vpop.f32.mrb[0].mxu0
        %419 = vmatprep.mubr.f32.mxu0 0.0
        %420 = vmatmul.mubr.f32.gmra.mrb[0].mxu0 %v278
        %v421 = vpop.f32.mrb[0].mxu0
        %v422 = vadd.f32 0.0, %v421
        %v423 = vpop.f32.mrb[0].mxu0
        %424 = vdwg.mxu0
        %vm425 = vcmask 130048
        %v427 = vsel %vm425, %v194, 0
        %v430 = vsel %vm425, %v195, 0
        %v433 = vsel %vm425, %v196, 0
        %v436 = vsel %vm425, %v197, 0
        %v439 = vsel %vm425, %v198, 0
        %v442 = vsel %vm425, %v199, 0
        %v445 = vsel %vm425, %v200, 0
        %v448 = vsel %vm425, %v201, 0
        %v451 = vsel %vm425, %v202, 0
        %v454 = vsel %vm425, %v203, 0
        %v457 = vsel %vm425, %v204, 0
        %v460 = vsel %vm425, %v205, 0
        %v463 = vsel %vm425, %v206, 0
        %v466 = vsel %vm425, %v207, 0
        %v469 = vsel %vm425, %v208, 0
        %v472 = vsel %vm425, %v209, 0
        %474 = vmatprep.subr.mxu0 0.0
        %475 = vmatpush1.msra.mxu0 %v228
        %476 = vmatprep.subr.mxu0 0.0
        %477 = vmatpush1.msra.mxu0 %v229
        %478 = vmatprep.subr.mxu0 0.0
        %479 = vmatpush1.msra.mxu0 0.0
        %480 = vmatprep.subr.mxu0 0.0
        %481 = vmatpush1.msra.mxu0 0.0
        %482 = vmatprep.subr.mxu0 0.0
        %483 = vmatpush1.msra.mxu0 0.0
        %484 = vmatprep.subr.mxu0 0.0
        %485 = vmatpush1.msra.mxu0 0.0
        %486 = vmatprep.subr.mxu0 0.0
        %487 = vmatpush1.msra.mxu0 0.0
        %488 = vmatprep.subr.mxu0 0.0
        %489 = vmatpush1.msra.mxu0 0.0
        %490 = vmatprep.subr.mxu0 0.0
        %491 = vmatpush1.msra.mxu0 0.0
        %492 = vmatprep.subr.mxu0 0.0
        %493 = vmatpush1.msra.mxu0 0.0
        %494 = vmatprep.subr.mxu0 0.0
        %495 = vmatpush1.msra.mxu0 0.0
        %496 = vmatprep.subr.mxu0 0.0
        %497 = vmatpush1.msra.mxu0 0.0
        %498 = vmatprep.subr.mxu0 0.0
        %499 = vmatpush1.msra.mxu0 0.0
        %500 = vmatprep.subr.mxu0 0.0
        %501 = vmatpush1.msra.mxu0 0.0
        %502 = vmatprep.subr.mxu0 0.0
        %503 = vmatpush1.msra.mxu0 0.0
        %504 = vmatprep.subr.mxu0 0.0
        %505 = vmatpush1.msra.mxu0 0.0
        %506 = vmatprep.subr.mxu0 0.0
        %507 = vmatpush1.msra.mxu0 0.0
        %508 = vmatprep.subr.mxu0 0.0
        %509 = vmatpush1.msra.mxu0 0.0
        %510 = vmatprep.subr.mxu0 0.0
        %511 = vmatpush1.msra.mxu0 0.0
        %512 = vmatprep.subr.mxu0 0.0
        %513 = vmatpush1.msra.mxu0 0.0
        %514 = vmatprep.subr.mxu0 0.0
        %515 = vmatpush1.msra.mxu0 0.0
        %516 = vmatprep.subr.mxu0 0.0
        %517 = vmatpush1.msra.mxu0 0.0
        %518 = vmatprep.subr.mxu0 0.0
        %519 = vmatpush1.msra.mxu0 0.0
        %520 = vmatprep.subr.mxu0 0.0
        %521 = vmatpush1.msra.mxu0 0.0
        %522 = vmatprep.subr.mxu0 0.0
        %523 = vmatpush1.msra.mxu0 0.0
        %524 = vmatprep.subr.mxu0 0.0
        %525 = vmatpush1.msra.mxu0 0.0
        %526 = vmatprep.subr.mxu0 0.0
        %527 = vmatpush1.msra.mxu0 0.0
        %528 = vmatprep.subr.mxu0 0.0
        %529 = vmatpush1.msra.mxu0 0.0
        %530 = vmatprep.subr.mxu0 0.0
        %531 = vmatpush1.msra.mxu0 0.0
        %532 = vmatprep.subr.mxu0 0.0
        %533 = vmatpush1.msra.mxu0 0.0
        %534 = vmatprep.subr.mxu0 0.0
        %535 = vmatpush1.msra.mxu0 0.0
        %536 = vmatprep.subr.mxu0 0.0
        %537 = vmatpush1.msra.mxu0 0.0
        %538 = vmatprep.mubr.f32.mxu0 0.0
        %539 = vmatmul.mubr.f32.gmra.mrb[0].mxu0 %v427
        %v540 = vpop.f32.mrb[0].mxu0
        %v541 = vadd.f32 %v347, %v540
        %v542 = vpop.f32.mrb[0].mxu0
        %543 = vmatprep.mubr.f32.mxu0 0.0
        %544 = vmatmul.mubr.f32.gmra.mrb[0].mxu0 %v430
        %v545 = vpop.f32.mrb[0].mxu0
        %v546 = vadd.f32 %v352, %v545
        %v547 = vpop.f32.mrb[0].mxu0
        %548 = vmatprep.mubr.f32.mxu0 0.0
        %549 = vmatmul.mubr.f32.gmra.mrb[0].mxu0 %v433
        %v550 = vpop.f32.mrb[0].mxu0
        %v551 = vadd.f32 %v357, %v550
        %v552 = vpop.f32.mrb[0].mxu0
        %553 = vmatprep.mubr.f32.mxu0 0.0
        %554 = vmatmul.mubr.f32.gmra.mrb[0].mxu0 %v436
        %v555 = vpop.f32.mrb[0].mxu0
        %v556 = vadd.f32 %v362, %v555
        %v557 = vpop.f32.mrb[0].mxu0
        %558 = vmatprep.mubr.f32.mxu0 0.0
        %559 = vmatmul.mubr.f32.gmra.mrb[0].mxu0 %v439
        %v560 = vpop.f32.mrb[0].mxu0
        %v561 = vadd.f32 %v367, %v560
        %v562 = vpop.f32.mrb[0].mxu0
        %563 = vmatprep.mubr.f32.mxu0 0.0
        %564 = vmatmul.mubr.f32.gmra.mrb[0].mxu0 %v442
        %v565 = vpop.f32.mrb[0].mxu0
        %v566 = vadd.f32 %v372, %v565
        %v567 = vpop.f32.mrb[0].mxu0
        %568 = vmatprep.mubr.f32.mxu0 0.0
        %569 = vmatmul.mubr.f32.gmra.mrb[0].mxu0 %v445
        %v570 = vpop.f32.mrb[0].mxu0
        %v571 = vadd.f32 %v377, %v570
        %v572 = vpop.f32.mrb[0].mxu0
        %573 = vmatprep.mubr.f32.mxu0 0.0
        %574 = vmatmul.mubr.f32.gmra.mrb[0].mxu0 %v448
        %v575 = vpop.f32.mrb[0].mxu0
        %v576 = vadd.f32 %v382, %v575
        %v577 = vpop.f32.mrb[0].mxu0
        %578 = vmatprep.mubr.f32.mxu0 0.0
        %579 = vmatmul.mubr.f32.gmra.mrb[0].mxu0 %v451
        %v580 = vpop.f32.mrb[0].mxu0
        %v581 = vadd.f32 %v387, %v580
        %v582 = vpop.f32.mrb[0].mxu0
        %583 = vmatprep.mubr.f32.mxu0 0.0
        %584 = vmatmul.mubr.f32.gmra.mrb[0].mxu0 %v454
        %v585 = vpop.f32.mrb[0].mxu0
        %v586 = vadd.f32 %v392, %v585
        %v587 = vpop.f32.mrb[0].mxu0
        %588 = vmatprep.mubr.f32.mxu0 0.0
        %589 = vmatmul.mubr.f32.gmra.mrb[0].mxu0 %v457
        %v590 = vpop.f32.mrb[0].mxu0
        %v591 = vadd.f32 %v397, %v590
        %v592 = vpop.f32.mrb[0].mxu0
        %593 = vmatprep.mubr.f32.mxu0 0.0
        %594 = vmatmul.mubr.f32.gmra.mrb[0].mxu0 %v460
        %v595 = vpop.f32.mrb[0].mxu0
        %v596 = vadd.f32 %v402, %v595
        %v597 = vpop.f32.mrb[0].mxu0
        %598 = vmatprep.mubr.f32.mxu0 0.0
        %599 = vmatmul.mubr.f32.gmra.mrb[0].mxu0 %v463
        %v600 = vpop.f32.mrb[0].mxu0
        %v601 = vadd.f32 %v407, %v600
        %v602 = vpop.f32.mrb[0].mxu0
        %603 = vmatprep.mubr.f32.mxu0 0.0
        %604 = vmatmul.mubr.f32.gmra.mrb[0].mxu0 %v466
        %v605 = vpop.f32.mrb[0].mxu0
        %v606 = vadd.f32 %v412, %v605
        %v607 = vpop.f32.mrb[0].mxu0
        %608 = vmatprep.mubr.f32.mxu0 0.0
        %609 = vmatmul.mubr.f32.gmra.mrb[0].mxu0 %v469
        %v610 = vpop.f32.mrb[0].mxu0
        %v611 = vadd.f32 %v417, %v610
        %v612 = vpop.f32.mrb[0].mxu0
        %613 = vmatprep.mubr.f32.mxu0 0.0
        %614 = vmatmul.mubr.f32.gmra.mrb[0].mxu0 %v472
        %v615 = vpop.f32.mrb[0].mxu0
        %v616 = vadd.f32 %v422, %v615
        %v617 = vpop.f32.mrb[0].mxu0
        %618 = vdwg.mxu0
        %v619 = vlaneseq
        %v620 = vshrl.u32 %v619, 7
        %v621 = vsub.s32 0, %v620
        %v622 = vrot.slane %v226, %v621
        %v623 = vadd.f32 %v541, %v622
        %v624 = vadd.f32 %v546, %v622
        %v625 = vadd.f32 %v551, %v622
        %v626 = vadd.f32 %v556, %v622
        %v627 = vadd.f32 %v561, %v622
        %v628 = vadd.f32 %v566, %v622
        %v629 = vadd.f32 %v571, %v622
        %v630 = vadd.f32 %v576, %v622
        %v631 = vadd.f32 %v581, %v622
        %v632 = vadd.f32 %v586, %v622
        %v633 = vadd.f32 %v591, %v622
        %v634 = vadd.f32 %v596, %v622
        %v635 = vadd.f32 %v601, %v622
        %v636 = vadd.f32 %v606, %v622
        %v637 = vadd.f32 %v611, %v622
        %v638 = vadd.f32 %v616, %v622
        %v639 = vmax.f32 %v623, 0.0
        %v640 = vmax.f32 %v624, 0.0
        %v641 = vmax.f32 %v625, 0.0
        %v642 = vmax.f32 %v626, 0.0
        %v643 = vmax.f32 %v627, 0.0
        %v644 = vmax.f32 %v628, 0.0
        %v645 = vmax.f32 %v629, 0.0
        %v646 = vmax.f32 %v630, 0.0
        %v647 = vmax.f32 %v631, 0.0
        %v648 = vmax.f32 %v632, 0.0
        %v649 = vmax.f32 %v633, 0.0
        %v650 = vmax.f32 %v634, 0.0
        %v651 = vmax.f32 %v635, 0.0
        %v652 = vmax.f32 %v636, 0.0
        %v653 = vmax.f32 %v637, 0.0
        %v654 = vmax.f32 %v638, 0.0
        %v655 = vlaneseq
        %v656 = vshrl.u32 %v655, 7
        %v657 = vsub.s32 1, %v656
        %v658 = vrot.slane %v226, %v657
        %v659 = vmin.f32 %v639, %v658
        %v660 = vmin.f32 %v640, %v658
        %v661 = vmin.f32 %v641, %v658
        %v662 = vmin.f32 %v642, %v658
        %v663 = vmin.f32 %v643, %v658
        %v664 = vmin.f32 %v644, %v658
        %v665 = vmin.f32 %v645, %v658
        %v666 = vmin.f32 %v646, %v658
        %v667 = vmin.f32 %v647, %v658
        %v668 = vmin.f32 %v648, %v658
        %v669 = vmin.f32 %v649, %v658
        %v670 = vmin.f32 %v650, %v658
        %v671 = vmin.f32 %v651, %v658
        %v672 = vmin.f32 %v652, %v658
        %v673 = vmin.f32 %v653, %v658
        %v674 = vmin.f32 %v654, %v658
        %v675 = vld [vmem:[%s2 + $0x18] sm:$0xff]
        %v676 = vld [vmem:[%s2 + $0x20] sm:$0xff]
        %v677 = vld [vmem:[%s2 + $0x28] sm:$0xff]
        %v678 = vld [vmem:[%s2 + $0x30] sm:$0xff]
        %v679 = vld [vmem:[%s2 + $0x38] sm:$0xff]
        %v680 = vld [vmem:[%s2 + $0x40] sm:$0xff]
        %v681 = vld [vmem:[%s2 + $0x48] sm:$0xff]
        %v682 = vld [vmem:[%s2 + $0x50] sm:$0xff]
        %v683 = vld [vmem:[%s2 + $0x58] sm:$0xff]
        %v684 = vld [vmem:[%s2 + $0x60] sm:$0xff]
        %v685 = vld [vmem:[%s2 + $0x68] sm:$0xff]
        %v686 = vld [vmem:[%s2 + $0x70] sm:$0xff]
        %v687 = vld [vmem:[%s2 + $0x78] sm:$0xff]
        %v688 = vld [vmem:[%s2 + $0x80] sm:$0xff]
        %v689 = vld [vmem:[%s2 + $0x88] sm:$0xff]
        %v690 = vld [vmem:[%s2 + $0x90] sm:$0xff]
        %v691 = vlaneseq
        %v692 = vshrl.u32 %v691, 7
        %v693 = vsub.s32 2, %v692
        %v694 = vrot.slane %v226, %v693
        %695 = vmatprep.subr.mxu0 0.0
        %696 = vmatpush1.msra.mxu0 %v675
        %697 = vmatprep.subr.mxu0 0.0
        %698 = vmatpush1.msra.mxu0 %v676
        %699 = vmatprep.subr.mxu0 0.0
        %700 = vmatpush1.msra.mxu0 %v677
        %701 = vmatprep.subr.mxu0 0.0
        %702 = vmatpush1.msra.mxu0 %v678
        %703 = vmatprep.subr.mxu0 0.0
        %704 = vmatpush1.msra.mxu0 %v679
        %705 = vmatprep.subr.mxu0 0.0
        %706 = vmatpush1.msra.mxu0 %v680
        %707 = vmatprep.subr.mxu0 0.0
        %708 = vmatpush1.msra.mxu0 %v681
        %709 = vmatprep.subr.mxu0 0.0
        %710 = vmatpush1.msra.mxu0 %v682
        %711 = vmatprep.subr.mxu0 0.0
        %712 = vmatpush1.msra.mxu0 %v683
        %713 = vmatprep.subr.mxu0 0.0
        %714 = vmatpush1.msra.mxu0 %v684
        %715 = vmatprep.subr.mxu0 0.0
        %716 = vmatpush1.msra.mxu0 %v685
        %717 = vmatprep.subr.mxu0 0.0
        %718 = vmatpush1.msra.mxu0 %v686
        %719 = vmatprep.subr.mxu0 0.0
        %720 = vmatpush1.msra.mxu0 %v687
        %721 = vmatprep.subr.mxu0 0.0
        %722 = vmatpush1.msra.mxu0 %v688
        %723 = vmatprep.subr.mxu0 0.0
        %724 = vmatpush1.msra.mxu0 %v689
        %725 = vmatprep.subr.mxu0 0.0
        %726 = vmatpush1.msra.mxu0 %v690
        %727 = vmatprep.subr.mxu0 0.0
        %728 = vmatpush1.msra.mxu0 0.0
        %729 = vmatprep.subr.mxu0 0.0
        %730 = vmatpush1.msra.mxu0 0.0
        %731 = vmatprep.subr.mxu0 0.0
        %732 = vmatpush1.msra.mxu0 0.0
        %733 = vmatprep.subr.mxu0 0.0
        %734 = vmatpush1.msra.mxu0 0.0
        %735 = vmatprep.subr.mxu0 0.0
        %736 = vmatpush1.msra.mxu0 0.0
        %737 = vmatprep.subr.mxu0 0.0
        %738 = vmatpush1.msra.mxu0 0.0
        %739 = vmatprep.subr.mxu0 0.0
        %740 = vmatpush1.msra.mxu0 0.0
        %741 = vmatprep.subr.mxu0 0.0
        %742 = vmatpush1.msra.mxu0 0.0
        %743 = vmatprep.subr.mxu0 0.0
        %744 = vmatpush1.msra.mxu0 0.0
        %745 = vmatprep.subr.mxu0 0.0
        %746 = vmatpush1.msra.mxu0 0.0
        %747 = vmatprep.subr.mxu0 0.0
        %748 = vmatpush1.msra.mxu0 0.0
        %749 = vmatprep.subr.mxu0 0.0
        %750 = vmatpush1.msra.mxu0 0.0
        %751 = vmatprep.subr.mxu0 0.0
        %752 = vmatpush1.msra.mxu0 0.0
        %753 = vmatprep.subr.mxu0 0.0
        %754 = vmatpush1.msra.mxu0 0.0
        %755 = vmatprep.subr.mxu0 0.0
        %756 = vmatpush1.msra.mxu0 0.0
        %757 = vmatprep.subr.mxu0 0.0
        %758 = vmatpush1.msra.mxu0 0.0
        %759 = vmatprep.mubr.f32.mxu0 0.0
        %760 = vmatmul.mubr.f32.gmra.mrb[0].mxu0 %v659
        %v761 = vpop.f32.mrb[0].mxu0
        %v762 = vadd.f32 %v694, %v761
        %v763 = vpop.f32.mrb[0].mxu0
        %764 = vmatprep.mubr.f32.mxu0 0.0
        %765 = vmatmul.mubr.f32.gmra.mrb[0].mxu0 %v660
        %v766 = vpop.f32.mrb[0].mxu0
        %v767 = vadd.f32 %v694, %v766
        %v768 = vpop.f32.mrb[0].mxu0
        %769 = vmatprep.mubr.f32.mxu0 0.0
        %770 = vmatmul.mubr.f32.gmra.mrb[0].mxu0 %v661
        %v771 = vpop.f32.mrb[0].mxu0
        %v772 = vadd.f32 %v694, %v771
        %v773 = vpop.f32.mrb[0].mxu0
        %774 = vmatprep.mubr.f32.mxu0 0.0
        %775 = vmatmul.mubr.f32.gmra.mrb[0].mxu0 %v662
        %v776 = vpop.f32.mrb[0].mxu0
        %v777 = vadd.f32 %v694, %v776
        %v778 = vpop.f32.mrb[0].mxu0
        %779 = vmatprep.mubr.f32.mxu0 0.0
        %780 = vmatmul.mubr.f32.gmra.mrb[0].mxu0 %v663
        %v781 = vpop.f32.mrb[0].mxu0
        %v782 = vadd.f32 %v694, %v781
        %v783 = vpop.f32.mrb[0].mxu0
        %784 = vmatprep.mubr.f32.mxu0 0.0
        %785 = vmatmul.mubr.f32.gmra.mrb[0].mxu0 %v664
        %v786 = vpop.f32.mrb[0].mxu0
        %v787 = vadd.f32 %v694, %v786
        %v788 = vpop.f32.mrb[0].mxu0
        %789 = vmatprep.mubr.f32.mxu0 0.0
        %790 = vmatmul.mubr.f32.gmra.mrb[0].mxu0 %v665
        %v791 = vpop.f32.mrb[0].mxu0
        %v792 = vadd.f32 %v694, %v791
        %v793 = vpop.f32.mrb[0].mxu0
        %794 = vmatprep.mubr.f32.mxu0 0.0
        %795 = vmatmul.mubr.f32.gmra.mrb[0].mxu0 %v666
        %v796 = vpop.f32.mrb[0].mxu0
        %v797 = vadd.f32 %v694, %v796
        %v798 = vpop.f32.mrb[0].mxu0
        %799 = vmatprep.mubr.f32.mxu0 0.0
        %800 = vmatmul.mubr.f32.gmra.mrb[0].mxu0 %v667
        %v801 = vpop.f32.mrb[0].mxu0
        %v802 = vadd.f32 %v694, %v801
        %v803 = vpop.f32.mrb[0].mxu0
        %804 = vmatprep.mubr.f32.mxu0 0.0
        %805 = vmatmul.mubr.f32.gmra.mrb[0].mxu0 %v668
        %v806 = vpop.f32.mrb[0].mxu0
        %v807 = vadd.f32 %v694, %v806
        %v808 = vpop.f32.mrb[0].mxu0
        %809 = vmatprep.mubr.f32.mxu0 0.0
        %810 = vmatmul.mubr.f32.gmra.mrb[0].mxu0 %v669
        %v811 = vpop.f32.mrb[0].mxu0
        %v812 = vadd.f32 %v694, %v811
        %v813 = vpop.f32.mrb[0].mxu0
        %814 = vmatprep.mubr.f32.mxu0 0.0
        %815 = vmatmul.mubr.f32.gmra.mrb[0].mxu0 %v670
        %v816 = vpop.f32.mrb[0].mxu0
        %v817 = vadd.f32 %v694, %v816
        %v818 = vpop.f32.mrb[0].mxu0
        %819 = vmatprep.mubr.f32.mxu0 0.0
        %820 = vmatmul.mubr.f32.gmra.mrb[0].mxu0 %v671
        %v821 = vpop.f32.mrb[0].mxu0
        %v822 = vadd.f32 %v694, %v821
        %v823 = vpop.f32.mrb[0].mxu0
        %824 = vmatprep.mubr.f32.mxu0 0.0
        %825 = vmatmul.mubr.f32.gmra.mrb[0].mxu0 %v672
        %v826 = vpop.f32.mrb[0].mxu0
        %v827 = vadd.f32 %v694, %v826
        %v828 = vpop.f32.mrb[0].mxu0
        %829 = vmatprep.mubr.f32.mxu0 0.0
        %830 = vmatmul.mubr.f32.gmra.mrb[0].mxu0 %v673
        %v831 = vpop.f32.mrb[0].mxu0
        %v832 = vadd.f32 %v694, %v831
        %v833 = vpop.f32.mrb[0].mxu0
        %834 = vmatprep.mubr.f32.mxu0 0.0
        %835 = vmatmul.mubr.f32.gmra.mrb[0].mxu0 %v674
        %v836 = vpop.f32.mrb[0].mxu0
        %v837 = vadd.f32 %v694, %v836
        %v838 = vpop.f32.mrb[0].mxu0
        %839 = vdwg.mxu0
        %v840 = vmax.f32 %v762, 0.0
        %v841 = vmax.f32 %v767, 0.0
        %v842 = vmax.f32 %v772, 0.0
        %v843 = vmax.f32 %v777, 0.0
        %v844 = vmax.f32 %v782, 0.0
        %v845 = vmax.f32 %v787, 0.0
        %v846 = vmax.f32 %v792, 0.0
        %v847 = vmax.f32 %v797, 0.0
        %v848 = vmax.f32 %v802, 0.0
        %v849 = vmax.f32 %v807, 0.0
        %v850 = vmax.f32 %v812, 0.0
        %v851 = vmax.f32 %v817, 0.0
        %v852 = vmax.f32 %v822, 0.0
        %v853 = vmax.f32 %v827, 0.0
        %v854 = vmax.f32 %v832, 0.0
        %v855 = vmax.f32 %v837, 0.0
        %v856 = vlaneseq
        %v857 = vshrl.u32 %v856, 7
        %v858 = vsub.s32 3, %v857
        %v859 = vrot.slane %v226, %v858
        %v860 = vmin.f32 %v840, %v859
        %v861 = vmin.f32 %v841, %v859
        %v862 = vmin.f32 %v842, %v859
        %v863 = vmin.f32 %v843, %v859
        %v864 = vmin.f32 %v844, %v859
        %v865 = vmin.f32 %v845, %v859
        %v866 = vmin.f32 %v846, %v859
        %v867 = vmin.f32 %v847, %v859
        %v868 = vmin.f32 %v848, %v859
        %v869 = vmin.f32 %v849, %v859
        %v870 = vmin.f32 %v850, %v859
        %v871 = vmin.f32 %v851, %v859
        %v872 = vmin.f32 %v852, %v859
        %v873 = vmin.f32 %v853, %v859
        %v874 = vmin.f32 %v854, %v859
        %v875 = vmin.f32 %v855, %v859
        %v876 = vld [vmem:[%s2 + $0x98] sm:$0xff]
        %v877 = vld [vmem:[%s2 + $0xa0] sm:$0xff]
        %v878 = vld [vmem:[%s2 + $0xa8] sm:$0xff]
        %v879 = vld [vmem:[%s2 + $0xb0] sm:$0xff]
        %v880 = vld [vmem:[%s2 + $0xb8] sm:$0xff]
        %v881 = vld [vmem:[%s2 + $0xc0] sm:$0xff]
        %v882 = vld [vmem:[%s2 + $0xc8] sm:$0xff]
        %v883 = vld [vmem:[%s2 + $0xd0] sm:$0xff]
        %v884 = vld [vmem:[%s2 + $0xd8] sm:$0xff]
        %v885 = vld [vmem:[%s2 + $0xe0] sm:$0xff]
        %v886 = vld [vmem:[%s2 + $0xe8] sm:$0xff]
        %v887 = vld [vmem:[%s2 + $0xf0] sm:$0xff]
        %v888 = vld [vmem:[%s2 + $0xf8] sm:$0xff]
        %v889 = vld [vmem:[%s2 + $0x100] sm:$0xff]
        %v890 = vld [vmem:[%s2 + $0x108] sm:$0xff]
        %v891 = vld [vmem:[%s2 + $0x110] sm:$0xff]
        %v892 = vlaneseq
        %v893 = vshrl.u32 %v892, 7
        %v894 = vsub.s32 4, %v893
        %v895 = vrot.slane %v226, %v894
        %896 = vmatprep.subr.mxu0 0.0
        %897 = vmatpush1.msra.mxu0 %v876
        %898 = vmatprep.subr.mxu0 0.0
        %899 = vmatpush1.msra.mxu0 %v877
        %900 = vmatprep.subr.mxu0 0.0
        %901 = vmatpush1.msra.mxu0 %v878
        %902 = vmatprep.subr.mxu0 0.0
        %903 = vmatpush1.msra.mxu0 %v879
        %904 = vmatprep.subr.mxu0 0.0
        %905 = vmatpush1.msra.mxu0 %v880
        %906 = vmatprep.subr.mxu0 0.0
        %907 = vmatpush1.msra.mxu0 %v881
        %908 = vmatprep.subr.mxu0 0.0
        %909 = vmatpush1.msra.mxu0 %v882
        %910 = vmatprep.subr.mxu0 0.0
        %911 = vmatpush1.msra.mxu0 %v883
        %912 = vmatprep.subr.mxu0 0.0
        %913 = vmatpush1.msra.mxu0 %v884
        %914 = vmatprep.subr.mxu0 0.0
        %915 = vmatpush1.msra.mxu0 %v885
        %916 = vmatprep.subr.mxu0 0.0
        %917 = vmatpush1.msra.mxu0 %v886
        %918 = vmatprep.subr.mxu0 0.0
        %919 = vmatpush1.msra.mxu0 %v887
        %920 = vmatprep.subr.mxu0 0.0
        %921 = vmatpush1.msra.mxu0 %v888
        %922 = vmatprep.subr.mxu0 0.0
        %923 = vmatpush1.msra.mxu0 %v889
        %924 = vmatprep.subr.mxu0 0.0
        %925 = vmatpush1.msra.mxu0 %v890
        %926 = vmatprep.subr.mxu0 0.0
        %927 = vmatpush1.msra.mxu0 %v891
        %928 = vmatprep.subr.mxu0 0.0
        %929 = vmatpush1.msra.mxu0 0.0
        %930 = vmatprep.subr.mxu0 0.0
        %931 = vmatpush1.msra.mxu0 0.0
        %932 = vmatprep.subr.mxu0 0.0
        %933 = vmatpush1.msra.mxu0 0.0
        %934 = vmatprep.subr.mxu0 0.0
        %935 = vmatpush1.msra.mxu0 0.0
        %936 = vmatprep.subr.mxu0 0.0
        %937 = vmatpush1.msra.mxu0 0.0
        %938 = vmatprep.subr.mxu0 0.0
        %939 = vmatpush1.msra.mxu0 0.0
        %940 = vmatprep.subr.mxu0 0.0
        %941 = vmatpush1.msra.mxu0 0.0
        %942 = vmatprep.subr.mxu0 0.0
        %943 = vmatpush1.msra.mxu0 0.0
        %944 = vmatprep.subr.mxu0 0.0
        %945 = vmatpush1.msra.mxu0 0.0
        %946 = vmatprep.subr.mxu0 0.0
        %947 = vmatpush1.msra.mxu0 0.0
        %948 = vmatprep.subr.mxu0 0.0
        %949 = vmatpush1.msra.mxu0 0.0
        %950 = vmatprep.subr.mxu0 0.0
        %951 = vmatpush1.msra.mxu0 0.0
        %952 = vmatprep.subr.mxu0 0.0
        %953 = vmatpush1.msra.mxu0 0.0
        %954 = vmatprep.subr.mxu0 0.0
        %955 = vmatpush1.msra.mxu0 0.0
        %956 = vmatprep.subr.mxu0 0.0
        %957 = vmatpush1.msra.mxu0 0.0
        %958 = vmatprep.subr.mxu0 0.0
        %959 = vmatpush1.msra.mxu0 0.0
        %960 = vmatprep.mubr.f32.mxu0 0.0
        %961 = vmatmul.mubr.f32.gmra.mrb[0].mxu0 %v860
        %v962 = vpop.f32.mrb[0].mxu0
        %v963 = vadd.f32 %v895, %v962
        %v964 = vpop.f32.mrb[0].mxu0
        %965 = vmatprep.mubr.f32.mxu0 0.0
        %966 = vmatmul.mubr.f32.gmra.mrb[0].mxu0 %v861
        %v967 = vpop.f32.mrb[0].mxu0
        %v968 = vadd.f32 %v895, %v967
        %v969 = vpop.f32.mrb[0].mxu0
        %970 = vmatprep.mubr.f32.mxu0 0.0
        %971 = vmatmul.mubr.f32.gmra.mrb[0].mxu0 %v862
        %v972 = vpop.f32.mrb[0].mxu0
        %v973 = vadd.f32 %v895, %v972
        %v974 = vpop.f32.mrb[0].mxu0
        %975 = vmatprep.mubr.f32.mxu0 0.0
        %976 = vmatmul.mubr.f32.gmra.mrb[0].mxu0 %v863
        %v977 = vpop.f32.mrb[0].mxu0
        %v978 = vadd.f32 %v895, %v977
        %v979 = vpop.f32.mrb[0].mxu0
        %980 = vmatprep.mubr.f32.mxu0 0.0
        %981 = vmatmul.mubr.f32.gmra.mrb[0].mxu0 %v864
        %v982 = vpop.f32.mrb[0].mxu0
        %v983 = vadd.f32 %v895, %v982
        %v984 = vpop.f32.mrb[0].mxu0
        %985 = vmatprep.mubr.f32.mxu0 0.0
        %986 = vmatmul.mubr.f32.gmra.mrb[0].mxu0 %v865
        %v987 = vpop.f32.mrb[0].mxu0
        %v988 = vadd.f32 %v895, %v987
        %v989 = vpop.f32.mrb[0].mxu0
        %990 = vmatprep.mubr.f32.mxu0 0.0
        %991 = vmatmul.mubr.f32.gmra.mrb[0].mxu0 %v866
        %v992 = vpop.f32.mrb[0].mxu0
        %v993 = vadd.f32 %v895, %v992
        %v994 = vpop.f32.mrb[0].mxu0
        %995 = vmatprep.mubr.f32.mxu0 0.0
        %996 = vmatmul.mubr.f32.gmra.mrb[0].mxu0 %v867
        %v997 = vpop.f32.mrb[0].mxu0
        %v998 = vadd.f32 %v895, %v997
        %v999 = vpop.f32.mrb[0].mxu0
        %1000 = vmatprep.mubr.f32.mxu0 0.0
        %1001 = vmatmul.mubr.f32.gmra.mrb[0].mxu0 %v868
        %v1002 = vpop.f32.mrb[0].mxu0
        %v1003 = vadd.f32 %v895, %v1002
        %v1004 = vpop.f32.mrb[0].mxu0
        %1005 = vmatprep.mubr.f32.mxu0 0.0
        %1006 = vmatmul.mubr.f32.gmra.mrb[0].mxu0 %v869
        %v1007 = vpop.f32.mrb[0].mxu0
        %v1008 = vadd.f32 %v895, %v1007
        %v1009 = vpop.f32.mrb[0].mxu0
        %1010 = vmatprep.mubr.f32.mxu0 0.0
        %1011 = vmatmul.mubr.f32.gmra.mrb[0].mxu0 %v870
        %v1012 = vpop.f32.mrb[0].mxu0
        %v1013 = vadd.f32 %v895, %v1012
        %v1014 = vpop.f32.mrb[0].mxu0
        %1015 = vmatprep.mubr.f32.mxu0 0.0
        %1016 = vmatmul.mubr.f32.gmra.mrb[0].mxu0 %v871
        %v1017 = vpop.f32.mrb[0].mxu0
        %v1018 = vadd.f32 %v895, %v1017
        %v1019 = vpop.f32.mrb[0].mxu0
        %1020 = vmatprep.mubr.f32.mxu0 0.0
        %1021 = vmatmul.mubr.f32.gmra.mrb[0].mxu0 %v872
        %v1022 = vpop.f32.mrb[0].mxu0
        %v1023 = vadd.f32 %v895, %v1022
        %v1024 = vpop.f32.mrb[0].mxu0
        %1025 = vmatprep.mubr.f32.mxu0 0.0
        %1026 = vmatmul.mubr.f32.gmra.mrb[0].mxu0 %v873
        %v1027 = vpop.f32.mrb[0].mxu0
        %v1028 = vadd.f32 %v895, %v1027
        %v1029 = vpop.f32.mrb[0].mxu0
        %1030 = vmatprep.mubr.f32.mxu0 0.0
        %1031 = vmatmul.mubr.f32.gmra.mrb[0].mxu0 %v874
        %v1032 = vpop.f32.mrb[0].mxu0
        %v1033 = vadd.f32 %v895, %v1032
        %v1034 = vpop.f32.mrb[0].mxu0
        %1035 = vmatprep.mubr.f32.mxu0 0.0
        %1036 = vmatmul.mubr.f32.gmra.mrb[0].mxu0 %v875
        %v1037 = vpop.f32.mrb[0].mxu0
        %v1038 = vadd.f32 %v895, %v1037
        %v1039 = vpop.f32.mrb[0].mxu0
        %1040 = vdwg.mxu0
        %v1041 = vlaneseq
        %v1042 = vshrl.u32 %v1041, 7
        %v1043 = vsub.s32 5, %v1042
        %v1044 = vrot.slane %v226, %v1043
        %v1045 = vmax.f32 %v963, %v1044
        %v1046 = vmax.f32 %v968, %v1044
        %v1047 = vmax.f32 %v973, %v1044
        %v1048 = vmax.f32 %v978, %v1044
        %v1049 = vmax.f32 %v983, %v1044
        %v1050 = vmax.f32 %v988, %v1044
        %v1051 = vmax.f32 %v993, %v1044
        %v1052 = vmax.f32 %v998, %v1044
        %v1053 = vmax.f32 %v1003, %v1044
        %v1054 = vmax.f32 %v1008, %v1044
        %v1055 = vmax.f32 %v1013, %v1044
        %v1056 = vmax.f32 %v1018, %v1044
        %v1057 = vmax.f32 %v1023, %v1044
        %v1058 = vmax.f32 %v1028, %v1044
        %v1059 = vmax.f32 %v1033, %v1044
        %v1060 = vmax.f32 %v1038, %v1044
        %v1061 = vld [vmem:[%s2 + $0x118] sm:$0xff]
        %v1062 = vld [vmem:[%s2 + $0x120] sm:$0xff]
        %v1063 = vld [vmem:[%s2 + $0x128] sm:$0xff]
        %v1064 = vld [vmem:[%s2 + $0x130] sm:$0xff]
        %v1065 = vld [vmem:[%s2 + $0x138] sm:$0xff]
        %v1066 = vld [vmem:[%s2 + $0x140] sm:$0xff]
        %v1067 = vld [vmem:[%s2 + $0x148] sm:$0xff]
        %v1068 = vld [vmem:[%s2 + $0x150] sm:$0xff]
        %v1069 = vld [vmem:[%s2 + $0x158] sm:$0xff]
        %v1070 = vld [vmem:[%s2 + $0x160] sm:$0xff]
        %v1071 = vld [vmem:[%s2 + $0x168] sm:$0xff]
        %v1072 = vld [vmem:[%s2 + $0x170] sm:$0xff]
        %v1073 = vld [vmem:[%s2 + $0x178] sm:$0xff]
        %v1074 = vld [vmem:[%s2 + $0x180] sm:$0xff]
        %v1075 = vld [vmem:[%s2 + $0x188] sm:$0xff]
        %v1076 = vld [vmem:[%s2 + $0x190] sm:$0xff]
        %v1077 = vlaneseq
        %v1078 = vshrl.u32 %v1077, 7
        %v1079 = vsub.s32 6, %v1078
        %v1080 = vrot.slane %v226, %v1079
        %1081 = vmatprep.subr.mxu0 0.0
        %1082 = vmatpush1.msra.mxu0 %v1061
        %1083 = vmatprep.subr.mxu0 0.0
        %1084 = vmatpush1.msra.mxu0 %v1062
        %1085 = vmatprep.subr.mxu0 0.0
        %1086 = vmatpush1.msra.mxu0 %v1063
        %1087 = vmatprep.subr.mxu0 0.0
        %1088 = vmatpush1.msra.mxu0 %v1064
        %1089 = vmatprep.subr.mxu0 0.0
        %1090 = vmatpush1.msra.mxu0 %v1065
        %1091 = vmatprep.subr.mxu0 0.0
        %1092 = vmatpush1.msra.mxu0 %v1066
        %1093 = vmatprep.subr.mxu0 0.0
        %1094 = vmatpush1.msra.mxu0 %v1067
        %1095 = vmatprep.subr.mxu0 0.0
        %1096 = vmatpush1.msra.mxu0 %v1068
        %1097 = vmatprep.subr.mxu0 0.0
        %1098 = vmatpush1.msra.mxu0 %v1069
        %1099 = vmatprep.subr.mxu0 0.0
        %1100 = vmatpush1.msra.mxu0 %v1070
        %1101 = vmatprep.subr.mxu0 0.0
        %1102 = vmatpush1.msra.mxu0 %v1071
        %1103 = vmatprep.subr.mxu0 0.0
        %1104 = vmatpush1.msra.mxu0 %v1072
        %1105 = vmatprep.subr.mxu0 0.0
        %1106 = vmatpush1.msra.mxu0 %v1073
        %1107 = vmatprep.subr.mxu0 0.0
        %1108 = vmatpush1.msra.mxu0 %v1074
        %1109 = vmatprep.subr.mxu0 0.0
        %1110 = vmatpush1.msra.mxu0 %v1075
        %1111 = vmatprep.subr.mxu0 0.0
        %1112 = vmatpush1.msra.mxu0 %v1076
        %1113 = vmatprep.subr.mxu0 0.0
        %1114 = vmatpush1.msra.mxu0 0.0
        %1115 = vmatprep.subr.mxu0 0.0
        %1116 = vmatpush1.msra.mxu0 0.0
        %1117 = vmatprep.subr.mxu0 0.0
        %1118 = vmatpush1.msra.mxu0 0.0
        %1119 = vmatprep.subr.mxu0 0.0
        %1120 = vmatpush1.msra.mxu0 0.0
        %1121 = vmatprep.subr.mxu0 0.0
        %1122 = vmatpush1.msra.mxu0 0.0
        %1123 = vmatprep.subr.mxu0 0.0
        %1124 = vmatpush1.msra.mxu0 0.0
        %1125 = vmatprep.subr.mxu0 0.0
        %1126 = vmatpush1.msra.mxu0 0.0
        %1127 = vmatprep.subr.mxu0 0.0
        %1128 = vmatpush1.msra.mxu0 0.0
        %1129 = vmatprep.subr.mxu0 0.0
        %1130 = vmatpush1.msra.mxu0 0.0
        %1131 = vmatprep.subr.mxu0 0.0
        %1132 = vmatpush1.msra.mxu0 0.0
        %1133 = vmatprep.subr.mxu0 0.0
        %1134 = vmatpush1.msra.mxu0 0.0
        %1135 = vmatprep.subr.mxu0 0.0
        %1136 = vmatpush1.msra.mxu0 0.0
        %1137 = vmatprep.subr.mxu0 0.0
        %1138 = vmatpush1.msra.mxu0 0.0
        %1139 = vmatprep.subr.mxu0 0.0
        %1140 = vmatpush1.msra.mxu0 0.0
        %1141 = vmatprep.subr.mxu0 0.0
        %1142 = vmatpush1.msra.mxu0 0.0
        %1143 = vmatprep.subr.mxu0 0.0
        %1144 = vmatpush1.msra.mxu0 0.0
        %1145 = vmatprep.mubr.f32.mxu0 0.0
        %1146 = vmatmul.mubr.f32.gmra.mrb[0].mxu0 %v1045
        %v1147 = vpop.f32.mrb[0].mxu0
        %v1148 = vadd.f32 %v1080, %v1147
        %v1149 = vpop.f32.mrb[0].mxu0
        %1150 = vmatprep.mubr.f32.mxu0 0.0
        %1151 = vmatmul.mubr.f32.gmra.mrb[0].mxu0 %v1046
        %v1152 = vpop.f32.mrb[0].mxu0
        %v1153 = vadd.f32 %v1080, %v1152
        %v1154 = vpop.f32.mrb[0].mxu0
        %1155 = vmatprep.mubr.f32.mxu0 0.0
        %1156 = vmatmul.mubr.f32.gmra.mrb[0].mxu0 %v1047
        %v1157 = vpop.f32.mrb[0].mxu0
        %v1158 = vadd.f32 %v1080, %v1157
        %v1159 = vpop.f32.mrb[0].mxu0
        %1160 = vmatprep.mubr.f32.mxu0 0.0
        %1161 = vmatmul.mubr.f32.gmra.mrb[0].mxu0 %v1048
        %v1162 = vpop.f32.mrb[0].mxu0
        %v1163 = vadd.f32 %v1080, %v1162
        %v1164 = vpop.f32.mrb[0].mxu0
        %1165 = vmatprep.mubr.f32.mxu0 0.0
        %1166 = vmatmul.mubr.f32.gmra.mrb[0].mxu0 %v1049
        %v1167 = vpop.f32.mrb[0].mxu0
        %v1168 = vadd.f32 %v1080, %v1167
        %v1169 = vpop.f32.mrb[0].mxu0
        %1170 = vmatprep.mubr.f32.mxu0 0.0
        %1171 = vmatmul.mubr.f32.gmra.mrb[0].mxu0 %v1050
        %v1172 = vpop.f32.mrb[0].mxu0
        %v1173 = vadd.f32 %v1080, %v1172
        %v1174 = vpop.f32.mrb[0].mxu0
        %1175 = vmatprep.mubr.f32.mxu0 0.0
        %1176 = vmatmul.mubr.f32.gmra.mrb[0].mxu0 %v1051
        %v1177 = vpop.f32.mrb[0].mxu0
        %v1178 = vadd.f32 %v1080, %v1177
        %v1179 = vpop.f32.mrb[0].mxu0
        %1180 = vmatprep.mubr.f32.mxu0 0.0
        %1181 = vmatmul.mubr.f32.gmra.mrb[0].mxu0 %v1052
        %v1182 = vpop.f32.mrb[0].mxu0
        %v1183 = vadd.f32 %v1080, %v1182
        %v1184 = vpop.f32.mrb[0].mxu0
        %1185 = vmatprep.mubr.f32.mxu0 0.0
        %1186 = vmatmul.mubr.f32.gmra.mrb[0].mxu0 %v1053
        %v1187 = vpop.f32.mrb[0].mxu0
        %v1188 = vadd.f32 %v1080, %v1187
        %v1189 = vpop.f32.mrb[0].mxu0
        %1190 = vmatprep.mubr.f32.mxu0 0.0
        %1191 = vmatmul.mubr.f32.gmra.mrb[0].mxu0 %v1054
        %v1192 = vpop.f32.mrb[0].mxu0
        %v1193 = vadd.f32 %v1080, %v1192
        %v1194 = vpop.f32.mrb[0].mxu0
        %1195 = vmatprep.mubr.f32.mxu0 0.0
        %1196 = vmatmul.mubr.f32.gmra.mrb[0].mxu0 %v1055
        %v1197 = vpop.f32.mrb[0].mxu0
        %v1198 = vadd.f32 %v1080, %v1197
        %v1199 = vpop.f32.mrb[0].mxu0
        %1200 = vmatprep.mubr.f32.mxu0 0.0
        %1201 = vmatmul.mubr.f32.gmra.mrb[0].mxu0 %v1056
        %v1202 = vpop.f32.mrb[0].mxu0
        %v1203 = vadd.f32 %v1080, %v1202
        %v1204 = vpop.f32.mrb[0].mxu0
        %1205 = vmatprep.mubr.f32.mxu0 0.0
        %1206 = vmatmul.mubr.f32.gmra.mrb[0].mxu0 %v1057
        %v1207 = vpop.f32.mrb[0].mxu0
        %v1208 = vadd.f32 %v1080, %v1207
        %v1209 = vpop.f32.mrb[0].mxu0
        %1210 = vmatprep.mubr.f32.mxu0 0.0
        %1211 = vmatmul.mubr.f32.gmra.mrb[0].mxu0 %v1058
        %v1212 = vpop.f32.mrb[0].mxu0
        %v1213 = vadd.f32 %v1080, %v1212
        %v1214 = vpop.f32.mrb[0].mxu0
        %1215 = vmatprep.mubr.f32.mxu0 0.0
        %1216 = vmatmul.mubr.f32.gmra.mrb[0].mxu0 %v1059
        %v1217 = vpop.f32.mrb[0].mxu0
        %v1218 = vadd.f32 %v1080, %v1217
        %v1219 = vpop.f32.mrb[0].mxu0
        %1220 = vmatprep.mubr.f32.mxu0 0.0
        %1221 = vmatmul.mubr.f32.gmra.mrb[0].mxu0 %v1060
        %v1222 = vpop.f32.mrb[0].mxu0
        %v1223 = vadd.f32 %v1080, %v1222
        %v1224 = vpop.f32.mrb[0].mxu0
        %1225 = vdwg.mxu0
        %v1226 = vmax.f32 %v1148, 0.0
        %v1227 = vmax.f32 %v1153, 0.0
        %v1228 = vmax.f32 %v1158, 0.0
        %v1229 = vmax.f32 %v1163, 0.0
        %v1230 = vmax.f32 %v1168, 0.0
        %v1231 = vmax.f32 %v1173, 0.0
        %v1232 = vmax.f32 %v1178, 0.0
        %v1233 = vmax.f32 %v1183, 0.0
        %v1234 = vmax.f32 %v1188, 0.0
        %v1235 = vmax.f32 %v1193, 0.0
        %v1236 = vmax.f32 %v1198, 0.0
        %v1237 = vmax.f32 %v1203, 0.0
        %v1238 = vmax.f32 %v1208, 0.0
        %v1239 = vmax.f32 %v1213, 0.0
        %v1240 = vmax.f32 %v1218, 0.0
        %v1241 = vmax.f32 %v1223, 0.0
        %v1242 = vlaneseq
        %v1243 = vshrl.u32 %v1242, 7
        %v1244 = vsub.s32 7, %v1243
        %v1245 = vrot.slane %v226, %v1244
        %v1246 = vmin.f32 %v1226, %v1245
        %v1247 = vmin.f32 %v1227, %v1245
        %v1248 = vmin.f32 %v1228, %v1245
        %v1249 = vmin.f32 %v1229, %v1245
        %v1250 = vmin.f32 %v1230, %v1245
        %v1251 = vmin.f32 %v1231, %v1245
        %v1252 = vmin.f32 %v1232, %v1245
        %v1253 = vmin.f32 %v1233, %v1245
        %v1254 = vmin.f32 %v1234, %v1245
        %v1255 = vmin.f32 %v1235, %v1245
        %v1256 = vmin.f32 %v1236, %v1245
        %v1257 = vmin.f32 %v1237, %v1245
        %v1258 = vmin.f32 %v1238, %v1245
        %v1259 = vmin.f32 %v1239, %v1245
        %v1260 = vmin.f32 %v1240, %v1245
        %v1261 = vmin.f32 %v1241, %v1245
        %v1262 = vld [vmem:[%s2 + $0x198] sm:$0xff]
        %v1263 = vld [vmem:[%s2 + $0x1a0] sm:$0xff]
        %v1264 = vld [vmem:[%s2 + $0x1a8] sm:$0xff]
        %v1265 = vld [vmem:[%s2 + $0x1b0] sm:$0xff]
        %v1266 = vld [vmem:[%s2 + $0x1b8] sm:$0xff]
        %v1267 = vld [vmem:[%s2 + $0x1c0] sm:$0xff]
        %v1268 = vld [vmem:[%s2 + $0x1c8] sm:$0xff]
        %v1269 = vld [vmem:[%s2 + $0x1d0] sm:$0xff]
        %v1270 = vld [vmem:[%s2 + $0x1d8] sm:$0xff]
        %v1271 = vld [vmem:[%s2 + $0x1e0] sm:$0xff]
        %v1272 = vld [vmem:[%s2 + $0x1e8] sm:$0xff]
        %v1273 = vld [vmem:[%s2 + $0x1f0] sm:$0xff]
        %v1274 = vld [vmem:[%s2 + $0x1f8] sm:$0xff]
        %v1275 = vld [vmem:[%s2 + $0x200] sm:$0xff]
        %v1276 = vld [vmem:[%s2 + $0x208] sm:$0xff]
        %v1277 = vld [vmem:[%s2 + $0x210] sm:$0xff]
        %v1278 = vlaneseq
        %v1279 = vshrl.u32 %v1278, 7
        %v1280 = vsub.s32 0, %v1279
        %v1281 = vrot.slane %v227, %v1280
        %1282 = vmatprep.subr.mxu0 0.0
        %1283 = vmatpush1.msra.mxu0 %v1262
        %1284 = vmatprep.subr.mxu0 0.0
        %1285 = vmatpush1.msra.mxu0 %v1263
        %1286 = vmatprep.subr.mxu0 0.0
        %1287 = vmatpush1.msra.mxu0 %v1264
        %1288 = vmatprep.subr.mxu0 0.0
        %1289 = vmatpush1.msra.mxu0 %v1265
        %1290 = vmatprep.subr.mxu0 0.0
        %1291 = vmatpush1.msra.mxu0 %v1266
        %1292 = vmatprep.subr.mxu0 0.0
        %1293 = vmatpush1.msra.mxu0 %v1267
        %1294 = vmatprep.subr.mxu0 0.0
        %1295 = vmatpush1.msra.mxu0 %v1268
        %1296 = vmatprep.subr.mxu0 0.0
        %1297 = vmatpush1.msra.mxu0 %v1269
        %1298 = vmatprep.subr.mxu0 0.0
        %1299 = vmatpush1.msra.mxu0 %v1270
        %1300 = vmatprep.subr.mxu0 0.0
        %1301 = vmatpush1.msra.mxu0 %v1271
        %1302 = vmatprep.subr.mxu0 0.0
        %1303 = vmatpush1.msra.mxu0 %v1272
        %1304 = vmatprep.subr.mxu0 0.0
        %1305 = vmatpush1.msra.mxu0 %v1273
        %1306 = vmatprep.subr.mxu0 0.0
        %1307 = vmatpush1.msra.mxu0 %v1274
        %1308 = vmatprep.subr.mxu0 0.0
        %1309 = vmatpush1.msra.mxu0 %v1275
        %1310 = vmatprep.subr.mxu0 0.0
        %1311 = vmatpush1.msra.mxu0 %v1276
        %1312 = vmatprep.subr.mxu0 0.0
        %1313 = vmatpush1.msra.mxu0 %v1277
        %1314 = vmatprep.subr.mxu0 0.0
        %1315 = vmatpush1.msra.mxu0 0.0
        %1316 = vmatprep.subr.mxu0 0.0
        %1317 = vmatpush1.msra.mxu0 0.0
        %1318 = vmatprep.subr.mxu0 0.0
        %1319 = vmatpush1.msra.mxu0 0.0
        %1320 = vmatprep.subr.mxu0 0.0
        %1321 = vmatpush1.msra.mxu0 0.0
        %1322 = vmatprep.subr.mxu0 0.0
        %1323 = vmatpush1.msra.mxu0 0.0
        %1324 = vmatprep.subr.mxu0 0.0
        %1325 = vmatpush1.msra.mxu0 0.0
        %1326 = vmatprep.subr.mxu0 0.0
        %1327 = vmatpush1.msra.mxu0 0.0
        %1328 = vmatprep.subr.mxu0 0.0
        %1329 = vmatpush1.msra.mxu0 0.0
        %1330 = vmatprep.subr.mxu0 0.0
        %1331 = vmatpush1.msra.mxu0 0.0
        %1332 = vmatprep.subr.mxu0 0.0
        %1333 = vmatpush1.msra.mxu0 0.0
        %1334 = vmatprep.subr.mxu0 0.0
        %1335 = vmatpush1.msra.mxu0 0.0
        %1336 = vmatprep.subr.mxu0 0.0
        %1337 = vmatpush1.msra.mxu0 0.0
        %1338 = vmatprep.subr.mxu0 0.0
        %1339 = vmatpush1.msra.mxu0 0.0
        %1340 = vmatprep.subr.mxu0 0.0
        %1341 = vmatpush1.msra.mxu0 0.0
        %1342 = vmatprep.subr.mxu0 0.0
        %1343 = vmatpush1.msra.mxu0 0.0
        %1344 = vmatprep.subr.mxu0 0.0
        %1345 = vmatpush1.msra.mxu0 0.0
        %1346 = vmatprep.mubr.f32.mxu0 0.0
        %1347 = vmatmul.mubr.f32.gmra.mrb[0].mxu0 %v1246
        %v1348 = vpop.f32.mrb[0].mxu0
        %v1349 = vadd.f32 %v1281, %v1348
        %v1350 = vpop.f32.mrb[0].mxu0
        %1351 = vmatprep.mubr.f32.mxu0 0.0
        %1352 = vmatmul.mubr.f32.gmra.mrb[0].mxu0 %v1247
        %v1353 = vpop.f32.mrb[0].mxu0
        %v1354 = vadd.f32 %v1281, %v1353
        %v1355 = vpop.f32.mrb[0].mxu0
        %1356 = vmatprep.mubr.f32.mxu0 0.0
        %1357 = vmatmul.mubr.f32.gmra.mrb[0].mxu0 %v1248
        %v1358 = vpop.f32.mrb[0].mxu0
        %v1359 = vadd.f32 %v1281, %v1358
        %v1360 = vpop.f32.mrb[0].mxu0
        %1361 = vmatprep.mubr.f32.mxu0 0.0
        %1362 = vmatmul.mubr.f32.gmra.mrb[0].mxu0 %v1249
        %v1363 = vpop.f32.mrb[0].mxu0
        %v1364 = vadd.f32 %v1281, %v1363
        %v1365 = vpop.f32.mrb[0].mxu0
        %1366 = vmatprep.mubr.f32.mxu0 0.0
        %1367 = vmatmul.mubr.f32.gmra.mrb[0].mxu0 %v1250
        %v1368 = vpop.f32.mrb[0].mxu0
        %v1369 = vadd.f32 %v1281, %v1368
        %v1370 = vpop.f32.mrb[0].mxu0
        %1371 = vmatprep.mubr.f32.mxu0 0.0
        %1372 = vmatmul.mubr.f32.gmra.mrb[0].mxu0 %v1251
        %v1373 = vpop.f32.mrb[0].mxu0
        %v1374 = vadd.f32 %v1281, %v1373
        %v1375 = vpop.f32.mrb[0].mxu0
        %1376 = vmatprep.mubr.f32.mxu0 0.0
        %1377 = vmatmul.mubr.f32.gmra.mrb[0].mxu0 %v1252
        %v1378 = vpop.f32.mrb[0].mxu0
        %v1379 = vadd.f32 %v1281, %v1378
        %v1380 = vpop.f32.mrb[0].mxu0
        %1381 = vmatprep.mubr.f32.mxu0 0.0
        %1382 = vmatmul.mubr.f32.gmra.mrb[0].mxu0 %v1253
        %v1383 = vpop.f32.mrb[0].mxu0
        %v1384 = vadd.f32 %v1281, %v1383
        %v1385 = vpop.f32.mrb[0].mxu0
        %1386 = vmatprep.mubr.f32.mxu0 0.0
        %1387 = vmatmul.mubr.f32.gmra.mrb[0].mxu0 %v1254
        %v1388 = vpop.f32.mrb[0].mxu0
        %v1389 = vadd.f32 %v1281, %v1388
        %v1390 = vpop.f32.mrb[0].mxu0
        %1391 = vmatprep.mubr.f32.mxu0 0.0
        %1392 = vmatmul.mubr.f32.gmra.mrb[0].mxu0 %v1255
        %v1393 = vpop.f32.mrb[0].mxu0
        %v1394 = vadd.f32 %v1281, %v1393
        %v1395 = vpop.f32.mrb[0].mxu0
        %1396 = vmatprep.mubr.f32.mxu0 0.0
        %1397 = vmatmul.mubr.f32.gmra.mrb[0].mxu0 %v1256
        %v1398 = vpop.f32.mrb[0].mxu0
        %v1399 = vadd.f32 %v1281, %v1398
        %v1400 = vpop.f32.mrb[0].mxu0
        %1401 = vmatprep.mubr.f32.mxu0 0.0
        %1402 = vmatmul.mubr.f32.gmra.mrb[0].mxu0 %v1257
        %v1403 = vpop.f32.mrb[0].mxu0
        %v1404 = vadd.f32 %v1281, %v1403
        %v1405 = vpop.f32.mrb[0].mxu0
        %1406 = vmatprep.mubr.f32.mxu0 0.0
        %1407 = vmatmul.mubr.f32.gmra.mrb[0].mxu0 %v1258
        %v1408 = vpop.f32.mrb[0].mxu0
        %v1409 = vadd.f32 %v1281, %v1408
        %v1410 = vpop.f32.mrb[0].mxu0
        %1411 = vmatprep.mubr.f32.mxu0 0.0
        %1412 = vmatmul.mubr.f32.gmra.mrb[0].mxu0 %v1259
        %v1413 = vpop.f32.mrb[0].mxu0
        %v1414 = vadd.f32 %v1281, %v1413
        %v1415 = vpop.f32.mrb[0].mxu0
        %1416 = vmatprep.mubr.f32.mxu0 0.0
        %1417 = vmatmul.mubr.f32.gmra.mrb[0].mxu0 %v1260
        %v1418 = vpop.f32.mrb[0].mxu0
        %v1419 = vadd.f32 %v1281, %v1418
        %v1420 = vpop.f32.mrb[0].mxu0
        %1421 = vmatprep.mubr.f32.mxu0 0.0
        %1422 = vmatmul.mubr.f32.gmra.mrb[0].mxu0 %v1261
        %v1423 = vpop.f32.mrb[0].mxu0
        %v1424 = vadd.f32 %v1281, %v1423
        %v1425 = vpop.f32.mrb[0].mxu0
        %1426 = vdwg.mxu0
        %v1427 = vmax.f32 %v1349, 0.0
        %v1428 = vmax.f32 %v1354, 0.0
        %v1429 = vmax.f32 %v1359, 0.0
        %v1430 = vmax.f32 %v1364, 0.0
        %v1431 = vmax.f32 %v1369, 0.0
        %v1432 = vmax.f32 %v1374, 0.0
        %v1433 = vmax.f32 %v1379, 0.0
        %v1434 = vmax.f32 %v1384, 0.0
        %v1435 = vmax.f32 %v1389, 0.0
        %v1436 = vmax.f32 %v1394, 0.0
        %v1437 = vmax.f32 %v1399, 0.0
        %v1438 = vmax.f32 %v1404, 0.0
        %v1439 = vmax.f32 %v1409, 0.0
        %v1440 = vmax.f32 %v1414, 0.0
        %v1441 = vmax.f32 %v1419, 0.0
        %v1442 = vmax.f32 %v1424, 0.0
        %v1443 = vlaneseq
        %v1444 = vshrl.u32 %v1443, 7
        %v1445 = vsub.s32 1, %v1444
        %v1446 = vrot.slane %v227, %v1445
        %v1447 = vmin.f32 %v1427, %v1446
        %v1448 = vmin.f32 %v1428, %v1446
        %v1449 = vmin.f32 %v1429, %v1446
        %v1450 = vmin.f32 %v1430, %v1446
        %v1451 = vmin.f32 %v1431, %v1446
        %v1452 = vmin.f32 %v1432, %v1446
        %v1453 = vmin.f32 %v1433, %v1446
        %v1454 = vmin.f32 %v1434, %v1446
        %v1455 = vmin.f32 %v1435, %v1446
        %v1456 = vmin.f32 %v1436, %v1446
        %v1457 = vmin.f32 %v1437, %v1446
        %v1458 = vmin.f32 %v1438, %v1446
        %v1459 = vmin.f32 %v1439, %v1446
        %v1460 = vmin.f32 %v1440, %v1446
        %v1461 = vmin.f32 %v1441, %v1446
        %v1462 = vmin.f32 %v1442, %v1446
        %v1463 = vld [vmem:[%s2 + $0x218] sm:$0xff]
        %v1464 = vld [vmem:[%s2 + $0x220] sm:$0xff]
        %v1465 = vld [vmem:[%s2 + $0x228] sm:$0xff]
        %v1466 = vld [vmem:[%s2 + $0x230] sm:$0xff]
        %v1467 = vld [vmem:[%s2 + $0x238] sm:$0xff]
        %v1468 = vld [vmem:[%s2 + $0x240] sm:$0xff]
        %v1469 = vld [vmem:[%s2 + $0x248] sm:$0xff]
        %v1470 = vld [vmem:[%s2 + $0x250] sm:$0xff]
        %v1471 = vld [vmem:[%s2 + $0x258] sm:$0xff]
        %v1472 = vld [vmem:[%s2 + $0x260] sm:$0xff]
        %v1473 = vld [vmem:[%s2 + $0x268] sm:$0xff]
        %v1474 = vld [vmem:[%s2 + $0x270] sm:$0xff]
        %v1475 = vld [vmem:[%s2 + $0x278] sm:$0xff]
        %v1476 = vld [vmem:[%s2 + $0x280] sm:$0xff]
        %v1477 = vld [vmem:[%s2 + $0x288] sm:$0xff]
        %v1478 = vld [vmem:[%s2 + $0x290] sm:$0xff]
        %1479 = vmatprep.subr.mxu0 0.0
        %1480 = vmatpush1.msra.mxu0 %v1463
        %1481 = vmatprep.subr.mxu0 0.0
        %1482 = vmatpush1.msra.mxu0 %v1464
        %1483 = vmatprep.subr.mxu0 0.0
        %1484 = vmatpush1.msra.mxu0 %v1465
        %1485 = vmatprep.subr.mxu0 0.0
        %1486 = vmatpush1.msra.mxu0 %v1466
        %1487 = vmatprep.subr.mxu0 0.0
        %1488 = vmatpush1.msra.mxu0 %v1467
        %1489 = vmatprep.subr.mxu0 0.0
        %1490 = vmatpush1.msra.mxu0 %v1468
        %1491 = vmatprep.subr.mxu0 0.0
        %1492 = vmatpush1.msra.mxu0 %v1469
        %1493 = vmatprep.subr.mxu0 0.0
        %1494 = vmatpush1.msra.mxu0 %v1470
        %1495 = vmatprep.subr.mxu0 0.0
        %1496 = vmatpush1.msra.mxu0 %v1471
        %1497 = vmatprep.subr.mxu0 0.0
        %1498 = vmatpush1.msra.mxu0 %v1472
        %1499 = vmatprep.subr.mxu0 0.0
        %1500 = vmatpush1.msra.mxu0 %v1473
        %1501 = vmatprep.subr.mxu0 0.0
        %1502 = vmatpush1.msra.mxu0 %v1474
        %1503 = vmatprep.subr.mxu0 0.0
        %1504 = vmatpush1.msra.mxu0 %v1475
        %1505 = vmatprep.subr.mxu0 0.0
        %1506 = vmatpush1.msra.mxu0 %v1476
        %1507 = vmatprep.subr.mxu0 0.0
        %1508 = vmatpush1.msra.mxu0 %v1477
        %1509 = vmatprep.subr.mxu0 0.0
        %1510 = vmatpush1.msra.mxu0 %v1478
        %1511 = vmatprep.subr.mxu0 0.0
        %1512 = vmatpush1.msra.mxu0 0.0
        %1513 = vmatprep.subr.mxu0 0.0
        %1514 = vmatpush1.msra.mxu0 0.0
        %1515 = vmatprep.subr.mxu0 0.0
        %1516 = vmatpush1.msra.mxu0 0.0
        %1517 = vmatprep.subr.mxu0 0.0
        %1518 = vmatpush1.msra.mxu0 0.0
        %1519 = vmatprep.subr.mxu0 0.0
        %1520 = vmatpush1.msra.mxu0 0.0
        %1521 = vmatprep.subr.mxu0 0.0
        %1522 = vmatpush1.msra.mxu0 0.0
        %1523 = vmatprep.subr.mxu0 0.0
        %1524 = vmatpush1.msra.mxu0 0.0
        %1525 = vmatprep.subr.mxu0 0.0
        %1526 = vmatpush1.msra.mxu0 0.0
        %1527 = vmatprep.subr.mxu0 0.0
        %1528 = vmatpush1.msra.mxu0 0.0
        %1529 = vmatprep.subr.mxu0 0.0
        %1530 = vmatpush1.msra.mxu0 0.0
        %1531 = vmatprep.subr.mxu0 0.0
        %1532 = vmatpush1.msra.mxu0 0.0
        %1533 = vmatprep.subr.mxu0 0.0
        %1534 = vmatpush1.msra.mxu0 0.0
        %1535 = vmatprep.subr.mxu0 0.0
        %1536 = vmatpush1.msra.mxu0 0.0
        %1537 = vmatprep.subr.mxu0 0.0
        %1538 = vmatpush1.msra.mxu0 0.0
        %1539 = vmatprep.subr.mxu0 0.0
        %1540 = vmatpush1.msra.mxu0 0.0
        %1541 = vmatprep.subr.mxu0 0.0
        %1542 = vmatpush1.msra.mxu0 0.0
        %1543 = vmatprep.mubr.f32.mxu0 0.0
        %1544 = vmatmul.mubr.f32.gmra.mrb[0].mxu0 %v1447
        %v1545 = vpop.f32.mrb[0].mxu0
        %v1546 = vadd.f32 0.0, %v1545
        %v1547 = vpop.f32.mrb[0].mxu0
        %1548 = vmatprep.mubr.f32.mxu0 0.0
        %1549 = vmatmul.mubr.f32.gmra.mrb[0].mxu0 %v1448
        %v1550 = vpop.f32.mrb[0].mxu0
        %v1551 = vadd.f32 0.0, %v1550
        %v1552 = vpop.f32.mrb[0].mxu0
        %1553 = vmatprep.mubr.f32.mxu0 0.0
        %1554 = vmatmul.mubr.f32.gmra.mrb[0].mxu0 %v1449
        %v1555 = vpop.f32.mrb[0].mxu0
        %v1556 = vadd.f32 0.0, %v1555
        %v1557 = vpop.f32.mrb[0].mxu0
        %1558 = vmatprep.mubr.f32.mxu0 0.0
        %1559 = vmatmul.mubr.f32.gmra.mrb[0].mxu0 %v1450
        %v1560 = vpop.f32.mrb[0].mxu0
        %v1561 = vadd.f32 0.0, %v1560
        %v1562 = vpop.f32.mrb[0].mxu0
        %1563 = vmatprep.mubr.f32.mxu0 0.0
        %1564 = vmatmul.mubr.f32.gmra.mrb[0].mxu0 %v1451
        %v1565 = vpop.f32.mrb[0].mxu0
        %v1566 = vadd.f32 0.0, %v1565
        %v1567 = vpop.f32.mrb[0].mxu0
        %1568 = vmatprep.mubr.f32.mxu0 0.0
        %1569 = vmatmul.mubr.f32.gmra.mrb[0].mxu0 %v1452
        %v1570 = vpop.f32.mrb[0].mxu0
        %v1571 = vadd.f32 0.0, %v1570
        %v1572 = vpop.f32.mrb[0].mxu0
        %1573 = vmatprep.mubr.f32.mxu0 0.0
        %1574 = vmatmul.mubr.f32.gmra.mrb[0].mxu0 %v1453
        %v1575 = vpop.f32.mrb[0].mxu0
        %v1576 = vadd.f32 0.0, %v1575
        %v1577 = vpop.f32.mrb[0].mxu0
        %1578 = vmatprep.mubr.f32.mxu0 0.0
        %1579 = vmatmul.mubr.f32.gmra.mrb[0].mxu0 %v1454
        %v1580 = vpop.f32.mrb[0].mxu0
        %v1581 = vadd.f32 0.0, %v1580
        %v1582 = vpop.f32.mrb[0].mxu0
        %1583 = vmatprep.mubr.f32.mxu0 0.0
        %1584 = vmatmul.mubr.f32.gmra.mrb[0].mxu0 %v1455
        %v1585 = vpop.f32.mrb[0].mxu0
        %v1586 = vadd.f32 0.0, %v1585
        %v1587 = vpop.f32.mrb[0].mxu0
        %1588 = vmatprep.mubr.f32.mxu0 0.0
        %1589 = vmatmul.mubr.f32.gmra.mrb[0].mxu0 %v1456
        %v1590 = vpop.f32.mrb[0].mxu0
        %v1591 = vadd.f32 0.0, %v1590
        %v1592 = vpop.f32.mrb[0].mxu0
        %1593 = vmatprep.mubr.f32.mxu0 0.0
        %1594 = vmatmul.mubr.f32.gmra.mrb[0].mxu0 %v1457
        %v1595 = vpop.f32.mrb[0].mxu0
        %v1596 = vadd.f32 0.0, %v1595
        %v1597 = vpop.f32.mrb[0].mxu0
        %1598 = vmatprep.mubr.f32.mxu0 0.0
        %1599 = vmatmul.mubr.f32.gmra.mrb[0].mxu0 %v1458
        %v1600 = vpop.f32.mrb[0].mxu0
        %v1601 = vadd.f32 0.0, %v1600
        %v1602 = vpop.f32.mrb[0].mxu0
        %1603 = vmatprep.mubr.f32.mxu0 0.0
        %1604 = vmatmul.mubr.f32.gmra.mrb[0].mxu0 %v1459
        %v1605 = vpop.f32.mrb[0].mxu0
        %v1606 = vadd.f32 0.0, %v1605
        %v1607 = vpop.f32.mrb[0].mxu0
        %1608 = vmatprep.mubr.f32.mxu0 0.0
        %1609 = vmatmul.mubr.f32.gmra.mrb[0].mxu0 %v1460
        %v1610 = vpop.f32.mrb[0].mxu0
        %v1611 = vadd.f32 0.0, %v1610
        %v1612 = vpop.f32.mrb[0].mxu0
        %1613 = vmatprep.mubr.f32.mxu0 0.0
        %1614 = vmatmul.mubr.f32.gmra.mrb[0].mxu0 %v1461
        %v1615 = vpop.f32.mrb[0].mxu0
        %v1616 = vadd.f32 0.0, %v1615
        %v1617 = vpop.f32.mrb[0].mxu0
        %1618 = vmatprep.mubr.f32.mxu0 0.0
        %1619 = vmatmul.mubr.f32.gmra.mrb[0].mxu0 %v1462
        %v1620 = vpop.f32.mrb[0].mxu0
        %v1621 = vadd.f32 0.0, %v1620
        %v1622 = vpop.f32.mrb[0].mxu0
        %1623 = vdwg.mxu0
        %1624 = vst [vmem:[%s180] sm:$0xff] %v1546
        %1625 = vst [vmem:[%s180 + $0x8] sm:$0xff] %v1551
        %1626 = vst [vmem:[%s180 + $0x10] sm:$0xff] %v1556
        %1627 = vst [vmem:[%s180 + $0x18] sm:$0xff] %v1561
        %1628 = vst [vmem:[%s180 + $0x20] sm:$0xff] %v1566
        %1629 = vst [vmem:[%s180 + $0x28] sm:$0xff] %v1571
        %1630 = vst [vmem:[%s180 + $0x30] sm:$0xff] %v1576
        %1631 = vst [vmem:[%s180 + $0x38] sm:$0xff] %v1581
        %1632 = vst [vmem:[%s180 + $0x40] sm:$0xff] %v1586
        %1633 = vst [vmem:[%s180 + $0x48] sm:$0xff] %v1591
        %1634 = vst [vmem:[%s180 + $0x50] sm:$0xff] %v1596
        %1635 = vst [vmem:[%s180 + $0x58] sm:$0xff] %v1601
        %1636 = vst [vmem:[%s180 + $0x60] sm:$0xff] %v1606
        %1637 = vst [vmem:[%s180 + $0x68] sm:$0xff] %v1611
        %1638 = vst [vmem:[%s180 + $0x70] sm:$0xff] %v1616
        %1639 = vst [vmem:[%s180 + $0x78] sm:$0xff] %v1621
        %s1640 = sand.u32 %s98, 1
        %s1641 = scalar_lea.sflag [#allocation3], %s1640
        %s1642 = sand.u32 %s98, 1
        %s1643 = smul.addr %s1642, 128
        %s1644 = scalar_lea.vmem [#allocation2], %s1643
        // Predicated region
        $region33: #{tpu_custom_call.1} parent=31 // pred_check
          %p1645 = pneg %p108
        $region34: #{tpu_custom_call.1} parent=31 // pred_check_branch
          %1647 = sbr.rel (%p1645) target = $region36
        $region35: #{tpu_custom_call.1} parent=31 // pred_region
          %s1648 = smul.u32 16, %s17
          %s1650 = ssub.s32 2048, 2048
          %1651 = vsyncadd %s1641, %s1650
          %s1652 = smul.addr %s1648, 128
          %s1653 = scalar_lea.hbm %s3, %s1652
          %s1654 = sshll.u32 %s1644, 4
          %s1655 = int_to_ptr.vmem [resolvable:$true] %s1654
          %1660 = dma.vmem_to_hbm [thread:$0]  %s1655, 2048, %s1653, %s1641, 128, 128, 8
        $region36: #{tpu_custom_call.1} parent=31 // pred_fallthru
          _
      $region32: #{tpu_custom_call.1} parent=5 // pred_fallthru
        _
      %p1661 = scmp.le.s32.totalorder 2, %s12
      // Predicated region
      $region37: #{tpu_custom_call.1} parent=5 // pred_check
        %p1662 = pneg %p1661
      $region38: #{tpu_custom_call.1} parent=5 // pred_check_branch
        %1664 = sbr.rel (%p1662) target = $region40
      $region39: #{tpu_custom_call.1} parent=5 // pred_region
        %s1665 = ssub.s32 %s12, 2
        // Predicated region
        $region41: #{tpu_custom_call.1} parent=39 // pred_check
          %p1666 = pneg %p114
        $region42: #{tpu_custom_call.1} parent=39 // pred_check_branch
          %1668 = sbr.rel (%p1666) target = $region44
        $region43: #{tpu_custom_call.1} parent=39 // pred_region
          %s1669 = sand.u32 %s99, 1
          %s1670 = scalar_lea.sflag [#allocation3], %s1669
          %s1671 = sand.u32 %s99, 1
          %s1672 = smul.addr %s1671, 128
          %s1673 = scalar_lea.vmem [#allocation2], %s1672
          %1674 = dma.done %s1670, 2048
        $region44: #{tpu_custom_call.1} parent=39 // pred_fallthru
          _
      $region40: #{tpu_custom_call.1} parent=5 // pred_fallthru
        _
    $region6: #{tpu_custom_call.1} parent=1 // loop_footer
      %s16 = sadd.s32 1, %s12
    $region7: #{tpu_custom_call.1} parent=1 // loop_footer_branch
      %11 = sbr.rel target = $region3
    $region8: #{tpu_custom_call.1} parent=1 // loop_exit
      _
    %1675 = vsyncpa [#allocation3], 1
    %s1676 = scalar_lea.sflag [#allocation3], 1
    %1677 = vsyncpa %s1676, 1

</llo_original>
